<compile_context>
chip_gen: v7x
topology: tpu7x:2x2x1
jax: 0.10.0
libtpu: 0.0.40
codegen_flags: <defaults>
</compile_context>

<pallas_src>
import functools

import jax
import jax.numpy as jnp
import numpy as np
from jax import lax
from jax.experimental import pallas as pl
from jax.experimental.pallas import tpu as pltpu

# ---------------------------------------------------------------------------
# Model dimensions & packed-parameter layout (PyTorch layout: W is (out, in)).
# ---------------------------------------------------------------------------
D_IN, H1, H2, D_OUT = 3, 16, 8, 1

_W1_OFF = 0
_B1_OFF = _W1_OFF + H1 * D_IN          # 48
_W2_OFF = _B1_OFF + H1                 # 64
_B2_OFF = _W2_OFF + H2 * H1            # 192
_W3_OFF = _B2_OFF + H2                 # 200
_B3_OFF = _W3_OFF + D_OUT * H2         # 208
PARAM_LEN = _B3_OFF + D_OUT            # 209

LANES = 128                            # batch elements per lane row
STRIP = 16                             # sublane strip (1 packed bf16 / 2 f32 vregs)


def _round_up(x, m):
    return (x + m - 1) // m * m


def _default_compute_dtype():
    """bf16 compute on chips with a bf16 VPU (v6e/v7x); f32 on v5e and older."""
    try:
        kind = jax.devices()[0].device_kind.lower()
    except Exception:
        return jnp.float32
    if "tpu" not in kind:
        return jnp.float32
    if any(v in kind for v in ("v2", "v3", "v4", "v5")):
        return jnp.float32          # no bf16 VALU on v5e and older -> keep f32
    return jnp.bfloat16


# ---------------------------------------------------------------------------
# Kernel
# ---------------------------------------------------------------------------
def _mlp_kernel(p_ref, x_ref, o_ref, *, strip, compute_dtype):
    # p_ref: (PARAM_PAD,) f32 in SMEM  -- all weights & biases, read as scalars.
    # x_ref: (3, TR, 128) in VMEM      -- batch dense on (sublane, lane).
    # o_ref: (TR, 128) f32 in VMEM.
    cdt = compute_dtype
    tile_rows = x_ref.shape[1]
    n_strips = tile_rows // strip

    # Hoist all 209 weight/bias scalar reads (and their casts) out of the
    # strip loop -- they are loop-invariant SMEM scalar loads.
    w1 = [[p_ref[_W1_OFF + j * D_IN + k].astype(cdt) for k in range(D_IN)]
          for j in range(H1)]
    b1 = [p_ref[_B1_OFF + j].astype(cdt) for j in range(H1)]
    w2 = [[p_ref[_W2_OFF + m * H1 + j].astype(cdt) for j in range(H1)]
          for m in range(H2)]
    b2 = [p_ref[_B2_OFF + m].astype(cdt) for m in range(H2)]
    w3 = [p_ref[_W3_OFF + m] for m in range(H2)]        # layer 3 stays f32
    b3 = p_ref[_B3_OFF]

    def strip_body(s, carry):
        base = pl.multiple_of(s * strip, strip)
        xs = [x_ref[k, pl.ds(base, strip), :].astype(cdt) for k in range(D_IN)]

        # Fused layer1 -> layer2: stream one hidden-1 unit at a time so only
        # ~12 (strip, 128) slabs are live (3 inputs + 1 hidden + 8 accs).
        acc2 = [None] * H2
        for j in range(H1):
            h = xs[0] * w1[j][0]
            for k in range(1, D_IN):
                h = h + xs[k] * w1[j][k]
            h = jnp.maximum(h + b1[j], 0.0)              # ReLU (layer 1)
            for m in range(H2):
                t = h * w2[m][j]
                acc2[m] = t if acc2[m] is None else acc2[m] + t

        # Layer 2 ReLU + layer 3 (f32 accumulation + f32 store).
        y = None
        for m in range(H2):
            h2 = jnp.maximum(acc2[m] + b2[m], 0.0)       # ReLU (layer 2)
            t = h2.astype(jnp.float32) * w3[m]
            y = t if y is None else y + t
        o_ref[pl.ds(base, strip), :] = (y + b3).astype(o_ref.dtype)
        return carry

    lax.fori_loop(0, n_strips, strip_body, 0)


# ---------------------------------------------------------------------------
# Wrapper
# ---------------------------------------------------------------------------
def pack_params(params):
    """Flatten (W1,b1,W2,b2,W3,b3) [PyTorch (out,in) layout] into one f32 vector."""
    w1, b1, w2, b2, w3, b3 = params
    flat = jnp.concatenate([
        w1.reshape(-1), b1.reshape(-1),
        w2.reshape(-1), b2.reshape(-1),
        w3.reshape(-1), b3.reshape(-1),
    ]).astype(jnp.float32)
    assert flat.shape[0] == PARAM_LEN
    pad = _round_up(PARAM_LEN, 8) - PARAM_LEN
    return jnp.pad(flat, (0, pad))


def velocity_predictor(x, params, *, tile_rows=512, compute_dtype=None,
                       feature_major=False):
    """x: (N, 3) [or (3, N) if feature_major].  Returns (N, 1) float32."""
    if compute_dtype is None:
        compute_dtype = _default_compute_dtype()

    if feature_major:
        F, N = x.shape
    else:
        N, F = x.shape
    assert F == D_IN

    packed = pack_params(params)

    # --- Tiling: lane-dense batch layout, big tiles, >=2 grid steps when possible.
    rows_needed = max(1, pl.cdiv(N, LANES))
    tr = min(tile_rows, _round_up(rows_needed, STRIP))         # don't exceed data
    if rows_needed >= 2 * STRIP:
        # v7x has 2 TensorCores: keep >=2 grid steps so ("parallel",) uses both.
        tr = min(tr, _round_up(pl.cdiv(rows_needed, 2), STRIP))
    tr = _round_up(max(tr, STRIP), STRIP)
    rows = _round_up(rows_needed, tr)
    n_pad = rows * LANES
    grid = (rows // tr,)

    # --- Layout plumbing (pad + view as (3, rows, 128)); cast input to the
    # compute dtype in the wrapper (halves input DMA on the bf16 path).
    xc = x.astype(compute_dtype)
    if feature_major:
        xp = jnp.pad(xc, ((0, 0), (0, n_pad - N))).reshape(D_IN, rows, LANES)
    else:
        # TODO(synk): extra HBM pass; prefer a (3, N) feature-major producer.
        xp = jnp.pad(xc, ((0, n_pad - N), (0, 0))).T.reshape(D_IN, rows, LANES)

    kernel = functools.partial(_mlp_kernel, strip=STRIP, compute_dtype=compute_dtype)

    n_elems = rows * LANES
    in_itemsize = jnp.dtype(compute_dtype).itemsize
    cost = pl.CostEstimate(
        flops=2 * (D_IN * H1 + H1 * H2 + H2 * D_OUT) * n_elems,
        transcendentals=0,
        bytes_accessed=n_elems * D_IN * in_itemsize + n_elems * 4 + int(packed.size) * 4,
    )

    out = pl.pallas_call(
        kernel,
        out_shape=jax.ShapeDtypeStruct((rows, LANES), jnp.float32),
        grid_spec=pltpu.PrefetchScalarGridSpec(
            num_scalar_prefetch=0,
            grid=grid,
            in_specs=[
                # All parameters, resident in SMEM (single small array).
                pl.BlockSpec(memory_space=pltpu.MemorySpace.SMEM),
                # Input tile: (3, tr, 128), contiguous lane-dense slab.
                pl.BlockSpec((D_IN, tr, LANES), lambda i: (0, i, 0)),
            ],
            out_specs=pl.BlockSpec((tr, LANES), lambda i: (i, 0)),
        ),
        compiler_params=pltpu.CompilerParams(
            dimension_semantics=("parallel",),   # shards grid across TCs on v7x
        ),
        cost_estimate=cost,
    )(packed, xp)

    # Undo the layout plumbing: (rows, 128) -> flat batch -> (N, 1).
    return out.reshape(-1)[:N].reshape(N, 1)


# ---------------------------------------------------------------------------
# Params / reference / test
# ---------------------------------------------------------------------------
def init_params(key):
    """Mirror nn.Linear defaults: W (out,in), b (out,), U(-1/sqrt(fan_in), +)."""
    dims = [(D_IN, H1), (H1, H2), (H2, D_OUT)]
    params = []
    for fan_in, fan_out in dims:
        key, kw, kb = jax.random.split(key, 3)
        bound = 1.0 / np.sqrt(fan_in)
        w = jax.random.uniform(kw, (fan_out, fan_in), jnp.float32, -bound, bound)
        b = jax.random.uniform(kb, (fan_out,), jnp.float32, -bound, bound)
        params += [w, b]
    return tuple(params)


def reference_np(x, params):
    """Pure numpy f32 reference of the PyTorch forward pass."""
    w1, b1, w2, b2, w3, b3 = [np.asarray(p, dtype=np.float32) for p in params]
    x = np.asarray(x, dtype=np.float32)
    h1 = np.maximum(x @ w1.T + b1, 0.0)
    h2 = np.maximum(h1 @ w2.T + b2, 0.0)
    return h2 @ w3.T + b3


if __name__ == "__main__":
    key = jax.random.PRNGKey(0)
    k_p, k_x1, k_x2, k_x3 = jax.random.split(key, 4)
    params = init_params(k_p)

    auto_dt = _default_compute_dtype()

    # N=64/200 exercise the small-batch clamp; N=4100 exercises a multi-step
    # grid (>=2 steps for v7x) plus the padded-rows path.
    for N, kx in [(64, k_x1), (200, k_x2), (4100, k_x3)]:
        x = jax.random.normal(kx, (N, D_IN), dtype=jnp.float32)
        ref = reference_np(x, params)

        # Strict correctness check on the f32 path (all TPU generations).
        out32 = jax.block_until_ready(
            velocity_predictor(x, params, compute_dtype=jnp.float32))
        assert out32.shape == (N, 1)
        np.testing.assert_allclose(np.asarray(out32), ref, rtol=1e-5, atol=2e-5)

        # Default path: bf16 compute on v6e/v7x (loose tolerance), f32 elsewhere.
        out = jax.block_until_ready(velocity_predictor(x, params))
        assert out.shape == (N, 1)
        if auto_dt == jnp.bfloat16:
            np.testing.assert_allclose(np.asarray(out), ref, rtol=1e-1, atol=2.5e-1)
        else:
            np.testing.assert_allclose(np.asarray(out), ref, rtol=1e-5, atol=2e-5)

    print("KERNEL_OK")
</pallas_src>

<mosaic_0001>
module attributes {stable_mosaic.version = 11 : i64} {
  func.func @_mlp_kernel(%arg0: i32, %arg1: memref<216xf32, #tpu.memory_space<smem>>, %arg2: memref<3x16x128xf32, #tpu.memory_space<vmem>>, %arg3: memref<16x128xf32, #tpu.memory_space<vmem>>) attributes {dimension_semantics = [#tpu.dimension_semantics<parallel>], iteration_bounds = array<i64: 1>, scalar_prefetch = 0 : i64, scratch_operands = 0 : i64, tpu.core_type = #tpu.core_type<tc>, window_params = [{transform_indices = @transform_0, window_bounds = array<i64: 216>}, {transform_indices = @transform_1, window_bounds = array<i64: 3, 16, 128>}, {transform_indices = @transform_2, window_bounds = array<i64: 16, 128>}]} {
    %c0 = arith.constant 0 : index
    %0 = memref.load %arg1[%c0] : memref<216xf32, #tpu.memory_space<smem>>
    %c1 = arith.constant 1 : index
    %1 = memref.load %arg1[%c1] : memref<216xf32, #tpu.memory_space<smem>>
    %c2 = arith.constant 2 : index
    %2 = memref.load %arg1[%c2] : memref<216xf32, #tpu.memory_space<smem>>
    %c3 = arith.constant 3 : index
    %3 = memref.load %arg1[%c3] : memref<216xf32, #tpu.memory_space<smem>>
    %c4 = arith.constant 4 : index
    %4 = memref.load %arg1[%c4] : memref<216xf32, #tpu.memory_space<smem>>
    %c5 = arith.constant 5 : index
    %5 = memref.load %arg1[%c5] : memref<216xf32, #tpu.memory_space<smem>>
    %c6 = arith.constant 6 : index
    %6 = memref.load %arg1[%c6] : memref<216xf32, #tpu.memory_space<smem>>
    %c7 = arith.constant 7 : index
    %7 = memref.load %arg1[%c7] : memref<216xf32, #tpu.memory_space<smem>>
    %c8 = arith.constant 8 : index
    %8 = memref.load %arg1[%c8] : memref<216xf32, #tpu.memory_space<smem>>
    %c9 = arith.constant 9 : index
    %9 = memref.load %arg1[%c9] : memref<216xf32, #tpu.memory_space<smem>>
    %c10 = arith.constant 10 : index
    %10 = memref.load %arg1[%c10] : memref<216xf32, #tpu.memory_space<smem>>
    %c11 = arith.constant 11 : index
    %11 = memref.load %arg1[%c11] : memref<216xf32, #tpu.memory_space<smem>>
    %c12 = arith.constant 12 : index
    %12 = memref.load %arg1[%c12] : memref<216xf32, #tpu.memory_space<smem>>
    %c13 = arith.constant 13 : index
    %13 = memref.load %arg1[%c13] : memref<216xf32, #tpu.memory_space<smem>>
    %c14 = arith.constant 14 : index
    %14 = memref.load %arg1[%c14] : memref<216xf32, #tpu.memory_space<smem>>
    %c15 = arith.constant 15 : index
    %15 = memref.load %arg1[%c15] : memref<216xf32, #tpu.memory_space<smem>>
    %c16 = arith.constant 16 : index
    %16 = memref.load %arg1[%c16] : memref<216xf32, #tpu.memory_space<smem>>
    %c17 = arith.constant 17 : index
    %17 = memref.load %arg1[%c17] : memref<216xf32, #tpu.memory_space<smem>>
    %c18 = arith.constant 18 : index
    %18 = memref.load %arg1[%c18] : memref<216xf32, #tpu.memory_space<smem>>
    %c19 = arith.constant 19 : index
    %19 = memref.load %arg1[%c19] : memref<216xf32, #tpu.memory_space<smem>>
    %c20 = arith.constant 20 : index
    %20 = memref.load %arg1[%c20] : memref<216xf32, #tpu.memory_space<smem>>
    %c21 = arith.constant 21 : index
    %21 = memref.load %arg1[%c21] : memref<216xf32, #tpu.memory_space<smem>>
    %c22 = arith.constant 22 : index
    %22 = memref.load %arg1[%c22] : memref<216xf32, #tpu.memory_space<smem>>
    %c23 = arith.constant 23 : index
    %23 = memref.load %arg1[%c23] : memref<216xf32, #tpu.memory_space<smem>>
    %c24 = arith.constant 24 : index
    %24 = memref.load %arg1[%c24] : memref<216xf32, #tpu.memory_space<smem>>
    %c25 = arith.constant 25 : index
    %25 = memref.load %arg1[%c25] : memref<216xf32, #tpu.memory_space<smem>>
    %c26 = arith.constant 26 : index
    %26 = memref.load %arg1[%c26] : memref<216xf32, #tpu.memory_space<smem>>
    %c27 = arith.constant 27 : index
    %27 = memref.load %arg1[%c27] : memref<216xf32, #tpu.memory_space<smem>>
    %c28 = arith.constant 28 : index
    %28 = memref.load %arg1[%c28] : memref<216xf32, #tpu.memory_space<smem>>
    %c29 = arith.constant 29 : index
    %29 = memref.load %arg1[%c29] : memref<216xf32, #tpu.memory_space<smem>>
    %c30 = arith.constant 30 : index
    %30 = memref.load %arg1[%c30] : memref<216xf32, #tpu.memory_space<smem>>
    %c31 = arith.constant 31 : index
    %31 = memref.load %arg1[%c31] : memref<216xf32, #tpu.memory_space<smem>>
    %c32 = arith.constant 32 : index
    %32 = memref.load %arg1[%c32] : memref<216xf32, #tpu.memory_space<smem>>
    %c33 = arith.constant 33 : index
    %33 = memref.load %arg1[%c33] : memref<216xf32, #tpu.memory_space<smem>>
    %c34 = arith.constant 34 : index
    %34 = memref.load %arg1[%c34] : memref<216xf32, #tpu.memory_space<smem>>
    %c35 = arith.constant 35 : index
    %35 = memref.load %arg1[%c35] : memref<216xf32, #tpu.memory_space<smem>>
    %c36 = arith.constant 36 : index
    %36 = memref.load %arg1[%c36] : memref<216xf32, #tpu.memory_space<smem>>
    %c37 = arith.constant 37 : index
    %37 = memref.load %arg1[%c37] : memref<216xf32, #tpu.memory_space<smem>>
    %c38 = arith.constant 38 : index
    %38 = memref.load %arg1[%c38] : memref<216xf32, #tpu.memory_space<smem>>
    %c39 = arith.constant 39 : index
    %39 = memref.load %arg1[%c39] : memref<216xf32, #tpu.memory_space<smem>>
    %c40 = arith.constant 40 : index
    %40 = memref.load %arg1[%c40] : memref<216xf32, #tpu.memory_space<smem>>
    %c41 = arith.constant 41 : index
    %41 = memref.load %arg1[%c41] : memref<216xf32, #tpu.memory_space<smem>>
    %c42 = arith.constant 42 : index
    %42 = memref.load %arg1[%c42] : memref<216xf32, #tpu.memory_space<smem>>
    %c43 = arith.constant 43 : index
    %43 = memref.load %arg1[%c43] : memref<216xf32, #tpu.memory_space<smem>>
    %c44 = arith.constant 44 : index
    %44 = memref.load %arg1[%c44] : memref<216xf32, #tpu.memory_space<smem>>
    %c45 = arith.constant 45 : index
    %45 = memref.load %arg1[%c45] : memref<216xf32, #tpu.memory_space<smem>>
    %c46 = arith.constant 46 : index
    %46 = memref.load %arg1[%c46] : memref<216xf32, #tpu.memory_space<smem>>
    %c47 = arith.constant 47 : index
    %47 = memref.load %arg1[%c47] : memref<216xf32, #tpu.memory_space<smem>>
    %c48 = arith.constant 48 : index
    %48 = memref.load %arg1[%c48] : memref<216xf32, #tpu.memory_space<smem>>
    %c49 = arith.constant 49 : index
    %49 = memref.load %arg1[%c49] : memref<216xf32, #tpu.memory_space<smem>>
    %c50 = arith.constant 50 : index
    %50 = memref.load %arg1[%c50] : memref<216xf32, #tpu.memory_space<smem>>
    %c51 = arith.constant 51 : index
    %51 = memref.load %arg1[%c51] : memref<216xf32, #tpu.memory_space<smem>>
    %c52 = arith.constant 52 : index
    %52 = memref.load %arg1[%c52] : memref<216xf32, #tpu.memory_space<smem>>
    %c53 = arith.constant 53 : index
    %53 = memref.load %arg1[%c53] : memref<216xf32, #tpu.memory_space<smem>>
    %c54 = arith.constant 54 : index
    %54 = memref.load %arg1[%c54] : memref<216xf32, #tpu.memory_space<smem>>
    %c55 = arith.constant 55 : index
    %55 = memref.load %arg1[%c55] : memref<216xf32, #tpu.memory_space<smem>>
    %c56 = arith.constant 56 : index
    %56 = memref.load %arg1[%c56] : memref<216xf32, #tpu.memory_space<smem>>
    %c57 = arith.constant 57 : index
    %57 = memref.load %arg1[%c57] : memref<216xf32, #tpu.memory_space<smem>>
    %c58 = arith.constant 58 : index
    %58 = memref.load %arg1[%c58] : memref<216xf32, #tpu.memory_space<smem>>
    %c59 = arith.constant 59 : index
    %59 = memref.load %arg1[%c59] : memref<216xf32, #tpu.memory_space<smem>>
    %c60 = arith.constant 60 : index
    %60 = memref.load %arg1[%c60] : memref<216xf32, #tpu.memory_space<smem>>
    %c61 = arith.constant 61 : index
    %61 = memref.load %arg1[%c61] : memref<216xf32, #tpu.memory_space<smem>>
    %c62 = arith.constant 62 : index
    %62 = memref.load %arg1[%c62] : memref<216xf32, #tpu.memory_space<smem>>
    %c63 = arith.constant 63 : index
    %63 = memref.load %arg1[%c63] : memref<216xf32, #tpu.memory_space<smem>>
    %c64 = arith.constant 64 : index
    %64 = memref.load %arg1[%c64] : memref<216xf32, #tpu.memory_space<smem>>
    %c65 = arith.constant 65 : index
    %65 = memref.load %arg1[%c65] : memref<216xf32, #tpu.memory_space<smem>>
    %c66 = arith.constant 66 : index
    %66 = memref.load %arg1[%c66] : memref<216xf32, #tpu.memory_space<smem>>
    %c67 = arith.constant 67 : index
    %67 = memref.load %arg1[%c67] : memref<216xf32, #tpu.memory_space<smem>>
    %c68 = arith.constant 68 : index
    %68 = memref.load %arg1[%c68] : memref<216xf32, #tpu.memory_space<smem>>
    %c69 = arith.constant 69 : index
    %69 = memref.load %arg1[%c69] : memref<216xf32, #tpu.memory_space<smem>>
    %c70 = arith.constant 70 : index
    %70 = memref.load %arg1[%c70] : memref<216xf32, #tpu.memory_space<smem>>
    %c71 = arith.constant 71 : index
    %71 = memref.load %arg1[%c71] : memref<216xf32, #tpu.memory_space<smem>>
    %c72 = arith.constant 72 : index
    %72 = memref.load %arg1[%c72] : memref<216xf32, #tpu.memory_space<smem>>
    %c73 = arith.constant 73 : index
    %73 = memref.load %arg1[%c73] : memref<216xf32, #tpu.memory_space<smem>>
    %c74 = arith.constant 74 : index
    %74 = memref.load %arg1[%c74] : memref<216xf32, #tpu.memory_space<smem>>
    %c75 = arith.constant 75 : index
    %75 = memref.load %arg1[%c75] : memref<216xf32, #tpu.memory_space<smem>>
    %c76 = arith.constant 76 : index
    %76 = memref.load %arg1[%c76] : memref<216xf32, #tpu.memory_space<smem>>
    %c77 = arith.constant 77 : index
    %77 = memref.load %arg1[%c77] : memref<216xf32, #tpu.memory_space<smem>>
    %c78 = arith.constant 78 : index
    %78 = memref.load %arg1[%c78] : memref<216xf32, #tpu.memory_space<smem>>
    %c79 = arith.constant 79 : index
    %79 = memref.load %arg1[%c79] : memref<216xf32, #tpu.memory_space<smem>>
    %c80 = arith.constant 80 : index
    %80 = memref.load %arg1[%c80] : memref<216xf32, #tpu.memory_space<smem>>
    %c81 = arith.constant 81 : index
    %81 = memref.load %arg1[%c81] : memref<216xf32, #tpu.memory_space<smem>>
    %c82 = arith.constant 82 : index
    %82 = memref.load %arg1[%c82] : memref<216xf32, #tpu.memory_space<smem>>
    %c83 = arith.constant 83 : index
    %83 = memref.load %arg1[%c83] : memref<216xf32, #tpu.memory_space<smem>>
    %c84 = arith.constant 84 : index
    %84 = memref.load %arg1[%c84] : memref<216xf32, #tpu.memory_space<smem>>
    %c85 = arith.constant 85 : index
    %85 = memref.load %arg1[%c85] : memref<216xf32, #tpu.memory_space<smem>>
    %c86 = arith.constant 86 : index
    %86 = memref.load %arg1[%c86] : memref<216xf32, #tpu.memory_space<smem>>
    %c87 = arith.constant 87 : index
    %87 = memref.load %arg1[%c87] : memref<216xf32, #tpu.memory_space<smem>>
    %c88 = arith.constant 88 : index
    %88 = memref.load %arg1[%c88] : memref<216xf32, #tpu.memory_space<smem>>
    %c89 = arith.constant 89 : index
    %89 = memref.load %arg1[%c89] : memref<216xf32, #tpu.memory_space<smem>>
    %c90 = arith.constant 90 : index
    %90 = memref.load %arg1[%c90] : memref<216xf32, #tpu.memory_space<smem>>
    %c91 = arith.constant 91 : index
    %91 = memref.load %arg1[%c91] : memref<216xf32, #tpu.memory_space<smem>>
    %c92 = arith.constant 92 : index
    %92 = memref.load %arg1[%c92] : memref<216xf32, #tpu.memory_space<smem>>
    %c93 = arith.constant 93 : index
    %93 = memref.load %arg1[%c93] : memref<216xf32, #tpu.memory_space<smem>>
    %c94 = arith.constant 94 : index
    %94 = memref.load %arg1[%c94] : memref<216xf32, #tpu.memory_space<smem>>
    %c95 = arith.constant 95 : index
    %95 = memref.load %arg1[%c95] : memref<216xf32, #tpu.memory_space<smem>>
    %c96 = arith.constant 96 : index
    %96 = memref.load %arg1[%c96] : memref<216xf32, #tpu.memory_space<smem>>
    %c97 = arith.constant 97 : index
    %97 = memref.load %arg1[%c97] : memref<216xf32, #tpu.memory_space<smem>>
    %c98 = arith.constant 98 : index
    %98 = memref.load %arg1[%c98] : memref<216xf32, #tpu.memory_space<smem>>
    %c99 = arith.constant 99 : index
    %99 = memref.load %arg1[%c99] : memref<216xf32, #tpu.memory_space<smem>>
    %c100 = arith.constant 100 : index
    %100 = memref.load %arg1[%c100] : memref<216xf32, #tpu.memory_space<smem>>
    %c101 = arith.constant 101 : index
    %101 = memref.load %arg1[%c101] : memref<216xf32, #tpu.memory_space<smem>>
    %c102 = arith.constant 102 : index
    %102 = memref.load %arg1[%c102] : memref<216xf32, #tpu.memory_space<smem>>
    %c103 = arith.constant 103 : index
    %103 = memref.load %arg1[%c103] : memref<216xf32, #tpu.memory_space<smem>>
    %c104 = arith.constant 104 : index
    %104 = memref.load %arg1[%c104] : memref<216xf32, #tpu.memory_space<smem>>
    %c105 = arith.constant 105 : index
    %105 = memref.load %arg1[%c105] : memref<216xf32, #tpu.memory_space<smem>>
    %c106 = arith.constant 106 : index
    %106 = memref.load %arg1[%c106] : memref<216xf32, #tpu.memory_space<smem>>
    %c107 = arith.constant 107 : index
    %107 = memref.load %arg1[%c107] : memref<216xf32, #tpu.memory_space<smem>>
    %c108 = arith.constant 108 : index
    %108 = memref.load %arg1[%c108] : memref<216xf32, #tpu.memory_space<smem>>
    %c109 = arith.constant 109 : index
    %109 = memref.load %arg1[%c109] : memref<216xf32, #tpu.memory_space<smem>>
    %c110 = arith.constant 110 : index
    %110 = memref.load %arg1[%c110] : memref<216xf32, #tpu.memory_space<smem>>
    %c111 = arith.constant 111 : index
    %111 = memref.load %arg1[%c111] : memref<216xf32, #tpu.memory_space<smem>>
    %c112 = arith.constant 112 : index
    %112 = memref.load %arg1[%c112] : memref<216xf32, #tpu.memory_space<smem>>
    %c113 = arith.constant 113 : index
    %113 = memref.load %arg1[%c113] : memref<216xf32, #tpu.memory_space<smem>>
    %c114 = arith.constant 114 : index
    %114 = memref.load %arg1[%c114] : memref<216xf32, #tpu.memory_space<smem>>
    %c115 = arith.constant 115 : index
    %115 = memref.load %arg1[%c115] : memref<216xf32, #tpu.memory_space<smem>>
    %c116 = arith.constant 116 : index
    %116 = memref.load %arg1[%c116] : memref<216xf32, #tpu.memory_space<smem>>
    %c117 = arith.constant 117 : index
    %117 = memref.load %arg1[%c117] : memref<216xf32, #tpu.memory_space<smem>>
    %c118 = arith.constant 118 : index
    %118 = memref.load %arg1[%c118] : memref<216xf32, #tpu.memory_space<smem>>
    %c119 = arith.constant 119 : index
    %119 = memref.load %arg1[%c119] : memref<216xf32, #tpu.memory_space<smem>>
    %c120 = arith.constant 120 : index
    %120 = memref.load %arg1[%c120] : memref<216xf32, #tpu.memory_space<smem>>
    %c121 = arith.constant 121 : index
    %121 = memref.load %arg1[%c121] : memref<216xf32, #tpu.memory_space<smem>>
    %c122 = arith.constant 122 : index
    %122 = memref.load %arg1[%c122] : memref<216xf32, #tpu.memory_space<smem>>
    %c123 = arith.constant 123 : index
    %123 = memref.load %arg1[%c123] : memref<216xf32, #tpu.memory_space<smem>>
    %c124 = arith.constant 124 : index
    %124 = memref.load %arg1[%c124] : memref<216xf32, #tpu.memory_space<smem>>
    %c125 = arith.constant 125 : index
    %125 = memref.load %arg1[%c125] : memref<216xf32, #tpu.memory_space<smem>>
    %c126 = arith.constant 126 : index
    %126 = memref.load %arg1[%c126] : memref<216xf32, #tpu.memory_space<smem>>
    %c127 = arith.constant 127 : index
    %127 = memref.load %arg1[%c127] : memref<216xf32, #tpu.memory_space<smem>>
    %c128 = arith.constant 128 : index
    %128 = memref.load %arg1[%c128] : memref<216xf32, #tpu.memory_space<smem>>
    %c129 = arith.constant 129 : index
    %129 = memref.load %arg1[%c129] : memref<216xf32, #tpu.memory_space<smem>>
    %c130 = arith.constant 130 : index
    %130 = memref.load %arg1[%c130] : memref<216xf32, #tpu.memory_space<smem>>
    %c131 = arith.constant 131 : index
    %131 = memref.load %arg1[%c131] : memref<216xf32, #tpu.memory_space<smem>>
    %c132 = arith.constant 132 : index
    %132 = memref.load %arg1[%c132] : memref<216xf32, #tpu.memory_space<smem>>
    %c133 = arith.constant 133 : index
    %133 = memref.load %arg1[%c133] : memref<216xf32, #tpu.memory_space<smem>>
    %c134 = arith.constant 134 : index
    %134 = memref.load %arg1[%c134] : memref<216xf32, #tpu.memory_space<smem>>
    %c135 = arith.constant 135 : index
    %135 = memref.load %arg1[%c135] : memref<216xf32, #tpu.memory_space<smem>>
    %c136 = arith.constant 136 : index
    %136 = memref.load %arg1[%c136] : memref<216xf32, #tpu.memory_space<smem>>
    %c137 = arith.constant 137 : index
    %137 = memref.load %arg1[%c137] : memref<216xf32, #tpu.memory_space<smem>>
    %c138 = arith.constant 138 : index
    %138 = memref.load %arg1[%c138] : memref<216xf32, #tpu.memory_space<smem>>
    %c139 = arith.constant 139 : index
    %139 = memref.load %arg1[%c139] : memref<216xf32, #tpu.memory_space<smem>>
    %c140 = arith.constant 140 : index
    %140 = memref.load %arg1[%c140] : memref<216xf32, #tpu.memory_space<smem>>
    %c141 = arith.constant 141 : index
    %141 = memref.load %arg1[%c141] : memref<216xf32, #tpu.memory_space<smem>>
    %c142 = arith.constant 142 : index
    %142 = memref.load %arg1[%c142] : memref<216xf32, #tpu.memory_space<smem>>
    %c143 = arith.constant 143 : index
    %143 = memref.load %arg1[%c143] : memref<216xf32, #tpu.memory_space<smem>>
    %c144 = arith.constant 144 : index
    %144 = memref.load %arg1[%c144] : memref<216xf32, #tpu.memory_space<smem>>
    %c145 = arith.constant 145 : index
    %145 = memref.load %arg1[%c145] : memref<216xf32, #tpu.memory_space<smem>>
    %c146 = arith.constant 146 : index
    %146 = memref.load %arg1[%c146] : memref<216xf32, #tpu.memory_space<smem>>
    %c147 = arith.constant 147 : index
    %147 = memref.load %arg1[%c147] : memref<216xf32, #tpu.memory_space<smem>>
    %c148 = arith.constant 148 : index
    %148 = memref.load %arg1[%c148] : memref<216xf32, #tpu.memory_space<smem>>
    %c149 = arith.constant 149 : index
    %149 = memref.load %arg1[%c149] : memref<216xf32, #tpu.memory_space<smem>>
    %c150 = arith.constant 150 : index
    %150 = memref.load %arg1[%c150] : memref<216xf32, #tpu.memory_space<smem>>
    %c151 = arith.constant 151 : index
    %151 = memref.load %arg1[%c151] : memref<216xf32, #tpu.memory_space<smem>>
    %c152 = arith.constant 152 : index
    %152 = memref.load %arg1[%c152] : memref<216xf32, #tpu.memory_space<smem>>
    %c153 = arith.constant 153 : index
    %153 = memref.load %arg1[%c153] : memref<216xf32, #tpu.memory_space<smem>>
    %c154 = arith.constant 154 : index
    %154 = memref.load %arg1[%c154] : memref<216xf32, #tpu.memory_space<smem>>
    %c155 = arith.constant 155 : index
    %155 = memref.load %arg1[%c155] : memref<216xf32, #tpu.memory_space<smem>>
    %c156 = arith.constant 156 : index
    %156 = memref.load %arg1[%c156] : memref<216xf32, #tpu.memory_space<smem>>
    %c157 = arith.constant 157 : index
    %157 = memref.load %arg1[%c157] : memref<216xf32, #tpu.memory_space<smem>>
    %c158 = arith.constant 158 : index
    %158 = memref.load %arg1[%c158] : memref<216xf32, #tpu.memory_space<smem>>
    %c159 = arith.constant 159 : index
    %159 = memref.load %arg1[%c159] : memref<216xf32, #tpu.memory_space<smem>>
    %c160 = arith.constant 160 : index
    %160 = memref.load %arg1[%c160] : memref<216xf32, #tpu.memory_space<smem>>
    %c161 = arith.constant 161 : index
    %161 = memref.load %arg1[%c161] : memref<216xf32, #tpu.memory_space<smem>>
    %c162 = arith.constant 162 : index
    %162 = memref.load %arg1[%c162] : memref<216xf32, #tpu.memory_space<smem>>
    %c163 = arith.constant 163 : index
    %163 = memref.load %arg1[%c163] : memref<216xf32, #tpu.memory_space<smem>>
    %c164 = arith.constant 164 : index
    %164 = memref.load %arg1[%c164] : memref<216xf32, #tpu.memory_space<smem>>
    %c165 = arith.constant 165 : index
    %165 = memref.load %arg1[%c165] : memref<216xf32, #tpu.memory_space<smem>>
    %c166 = arith.constant 166 : index
    %166 = memref.load %arg1[%c166] : memref<216xf32, #tpu.memory_space<smem>>
    %c167 = arith.constant 167 : index
    %167 = memref.load %arg1[%c167] : memref<216xf32, #tpu.memory_space<smem>>
    %c168 = arith.constant 168 : index
    %168 = memref.load %arg1[%c168] : memref<216xf32, #tpu.memory_space<smem>>
    %c169 = arith.constant 169 : index
    %169 = memref.load %arg1[%c169] : memref<216xf32, #tpu.memory_space<smem>>
    %c170 = arith.constant 170 : index
    %170 = memref.load %arg1[%c170] : memref<216xf32, #tpu.memory_space<smem>>
    %c171 = arith.constant 171 : index
    %171 = memref.load %arg1[%c171] : memref<216xf32, #tpu.memory_space<smem>>
    %c172 = arith.constant 172 : index
    %172 = memref.load %arg1[%c172] : memref<216xf32, #tpu.memory_space<smem>>
    %c173 = arith.constant 173 : index
    %173 = memref.load %arg1[%c173] : memref<216xf32, #tpu.memory_space<smem>>
    %c174 = arith.constant 174 : index
    %174 = memref.load %arg1[%c174] : memref<216xf32, #tpu.memory_space<smem>>
    %c175 = arith.constant 175 : index
    %175 = memref.load %arg1[%c175] : memref<216xf32, #tpu.memory_space<smem>>
    %c176 = arith.constant 176 : index
    %176 = memref.load %arg1[%c176] : memref<216xf32, #tpu.memory_space<smem>>
    %c177 = arith.constant 177 : index
    %177 = memref.load %arg1[%c177] : memref<216xf32, #tpu.memory_space<smem>>
    %c178 = arith.constant 178 : index
    %178 = memref.load %arg1[%c178] : memref<216xf32, #tpu.memory_space<smem>>
    %c179 = arith.constant 179 : index
    %179 = memref.load %arg1[%c179] : memref<216xf32, #tpu.memory_space<smem>>
    %c180 = arith.constant 180 : index
    %180 = memref.load %arg1[%c180] : memref<216xf32, #tpu.memory_space<smem>>
    %c181 = arith.constant 181 : index
    %181 = memref.load %arg1[%c181] : memref<216xf32, #tpu.memory_space<smem>>
    %c182 = arith.constant 182 : index
    %182 = memref.load %arg1[%c182] : memref<216xf32, #tpu.memory_space<smem>>
    %c183 = arith.constant 183 : index
    %183 = memref.load %arg1[%c183] : memref<216xf32, #tpu.memory_space<smem>>
    %c184 = arith.constant 184 : index
    %184 = memref.load %arg1[%c184] : memref<216xf32, #tpu.memory_space<smem>>
    %c185 = arith.constant 185 : index
    %185 = memref.load %arg1[%c185] : memref<216xf32, #tpu.memory_space<smem>>
    %c186 = arith.constant 186 : index
    %186 = memref.load %arg1[%c186] : memref<216xf32, #tpu.memory_space<smem>>
    %c187 = arith.constant 187 : index
    %187 = memref.load %arg1[%c187] : memref<216xf32, #tpu.memory_space<smem>>
    %c188 = arith.constant 188 : index
    %188 = memref.load %arg1[%c188] : memref<216xf32, #tpu.memory_space<smem>>
    %c189 = arith.constant 189 : index
    %189 = memref.load %arg1[%c189] : memref<216xf32, #tpu.memory_space<smem>>
    %c190 = arith.constant 190 : index
    %190 = memref.load %arg1[%c190] : memref<216xf32, #tpu.memory_space<smem>>
    %c191 = arith.constant 191 : index
    %191 = memref.load %arg1[%c191] : memref<216xf32, #tpu.memory_space<smem>>
    %c192 = arith.constant 192 : index
    %192 = memref.load %arg1[%c192] : memref<216xf32, #tpu.memory_space<smem>>
    %c193 = arith.constant 193 : index
    %193 = memref.load %arg1[%c193] : memref<216xf32, #tpu.memory_space<smem>>
    %c194 = arith.constant 194 : index
    %194 = memref.load %arg1[%c194] : memref<216xf32, #tpu.memory_space<smem>>
    %c195 = arith.constant 195 : index
    %195 = memref.load %arg1[%c195] : memref<216xf32, #tpu.memory_space<smem>>
    %c196 = arith.constant 196 : index
    %196 = memref.load %arg1[%c196] : memref<216xf32, #tpu.memory_space<smem>>
    %c197 = arith.constant 197 : index
    %197 = memref.load %arg1[%c197] : memref<216xf32, #tpu.memory_space<smem>>
    %c198 = arith.constant 198 : index
    %198 = memref.load %arg1[%c198] : memref<216xf32, #tpu.memory_space<smem>>
    %c199 = arith.constant 199 : index
    %199 = memref.load %arg1[%c199] : memref<216xf32, #tpu.memory_space<smem>>
    %c200 = arith.constant 200 : index
    %200 = memref.load %arg1[%c200] : memref<216xf32, #tpu.memory_space<smem>>
    %c201 = arith.constant 201 : index
    %201 = memref.load %arg1[%c201] : memref<216xf32, #tpu.memory_space<smem>>
    %c202 = arith.constant 202 : index
    %202 = memref.load %arg1[%c202] : memref<216xf32, #tpu.memory_space<smem>>
    %c203 = arith.constant 203 : index
    %203 = memref.load %arg1[%c203] : memref<216xf32, #tpu.memory_space<smem>>
    %c204 = arith.constant 204 : index
    %204 = memref.load %arg1[%c204] : memref<216xf32, #tpu.memory_space<smem>>
    %c205 = arith.constant 205 : index
    %205 = memref.load %arg1[%c205] : memref<216xf32, #tpu.memory_space<smem>>
    %c206 = arith.constant 206 : index
    %206 = memref.load %arg1[%c206] : memref<216xf32, #tpu.memory_space<smem>>
    %c207 = arith.constant 207 : index
    %207 = memref.load %arg1[%c207] : memref<216xf32, #tpu.memory_space<smem>>
    %c208 = arith.constant 208 : index
    %208 = memref.load %arg1[%c208] : memref<216xf32, #tpu.memory_space<smem>>
    %c0_i32 = arith.constant 0 : i32
    %c16_i32 = arith.constant 16 : i32
    %209 = arith.muli %c0_i32, %c16_i32 : i32
    %210 = tpu.assume_multiple %209, 16 : i32
    %c0_0 = arith.constant 0 : index
    %211 = arith.index_cast %210 : i32 to index
    %c0_1 = arith.constant 0 : index
    %212 = vector.load %arg2[%c0_0, %211, %c0_1] : memref<3x16x128xf32, #tpu.memory_space<vmem>>, vector<1x16x128xf32>
    %213 = vector.shape_cast %212 : vector<1x16x128xf32> to vector<16x128xf32>
    %c1_2 = arith.constant 1 : index
    %214 = arith.index_cast %210 : i32 to index
    %c0_3 = arith.constant 0 : index
    %215 = vector.load %arg2[%c1_2, %214, %c0_3] : memref<3x16x128xf32, #tpu.memory_space<vmem>>, vector<1x16x128xf32>
    %216 = vector.shape_cast %215 : vector<1x16x128xf32> to vector<16x128xf32>
    %c2_4 = arith.constant 2 : index
    %217 = arith.index_cast %210 : i32 to index
    %c0_5 = arith.constant 0 : index
    %218 = vector.load %arg2[%c2_4, %217, %c0_5] : memref<3x16x128xf32, #tpu.memory_space<vmem>>, vector<1x16x128xf32>
    %219 = vector.shape_cast %218 : vector<1x16x128xf32> to vector<16x128xf32>
    %220 = vector.broadcast %0 : f32 to vector<16x128xf32>
    %221 = arith.mulf %213, %220 : vector<16x128xf32>
    %222 = vector.broadcast %1 : f32 to vector<16x128xf32>
    %223 = arith.mulf %216, %222 : vector<16x128xf32>
    %224 = arith.addf %221, %223 : vector<16x128xf32>
    %225 = vector.broadcast %2 : f32 to vector<16x128xf32>
    %226 = arith.mulf %219, %225 : vector<16x128xf32>
    %227 = arith.addf %224, %226 : vector<16x128xf32>
    %228 = vector.broadcast %48 : f32 to vector<16x128xf32>
    %229 = arith.addf %227, %228 : vector<16x128xf32>
    %cst = arith.constant 0.000000e+00 : f32
    %230 = vector.broadcast %cst : f32 to vector<16x128xf32>
    %231 = arith.maximumf %229, %230 : vector<16x128xf32>
    %232 = vector.broadcast %64 : f32 to vector<16x128xf32>
    %233 = arith.mulf %231, %232 : vector<16x128xf32>
    %234 = vector.broadcast %80 : f32 to vector<16x128xf32>
    %235 = arith.mulf %231, %234 : vector<16x128xf32>
    %236 = vector.broadcast %96 : f32 to vector<16x128xf32>
    %237 = arith.mulf %231, %236 : vector<16x128xf32>
    %238 = vector.broadcast %112 : f32 to vector<16x128xf32>
    %239 = arith.mulf %231, %238 : vector<16x128xf32>
    %240 = vector.broadcast %128 : f32 to vector<16x128xf32>
    %241 = arith.mulf %231, %240 : vector<16x128xf32>
    %242 = vector.broadcast %144 : f32 to vector<16x128xf32>
    %243 = arith.mulf %231, %242 : vector<16x128xf32>
    %244 = vector.broadcast %160 : f32 to vector<16x128xf32>
    %245 = arith.mulf %231, %244 : vector<16x128xf32>
    %246 = vector.broadcast %176 : f32 to vector<16x128xf32>
    %247 = arith.mulf %231, %246 : vector<16x128xf32>
    %248 = vector.broadcast %3 : f32 to vector<16x128xf32>
    %249 = arith.mulf %213, %248 : vector<16x128xf32>
    %250 = vector.broadcast %4 : f32 to vector<16x128xf32>
    %251 = arith.mulf %216, %250 : vector<16x128xf32>
    %252 = arith.addf %249, %251 : vector<16x128xf32>
    %253 = vector.broadcast %5 : f32 to vector<16x128xf32>
    %254 = arith.mulf %219, %253 : vector<16x128xf32>
    %255 = arith.addf %252, %254 : vector<16x128xf32>
    %256 = vector.broadcast %49 : f32 to vector<16x128xf32>
    %257 = arith.addf %255, %256 : vector<16x128xf32>
    %cst_6 = arith.constant 0.000000e+00 : f32
    %258 = vector.broadcast %cst_6 : f32 to vector<16x128xf32>
    %259 = arith.maximumf %257, %258 : vector<16x128xf32>
    %260 = vector.broadcast %65 : f32 to vector<16x128xf32>
    %261 = arith.mulf %259, %260 : vector<16x128xf32>
    %262 = arith.addf %233, %261 : vector<16x128xf32>
    %263 = vector.broadcast %81 : f32 to vector<16x128xf32>
    %264 = arith.mulf %259, %263 : vector<16x128xf32>
    %265 = arith.addf %235, %264 : vector<16x128xf32>
    %266 = vector.broadcast %97 : f32 to vector<16x128xf32>
    %267 = arith.mulf %259, %266 : vector<16x128xf32>
    %268 = arith.addf %237, %267 : vector<16x128xf32>
    %269 = vector.broadcast %113 : f32 to vector<16x128xf32>
    %270 = arith.mulf %259, %269 : vector<16x128xf32>
    %271 = arith.addf %239, %270 : vector<16x128xf32>
    %272 = vector.broadcast %129 : f32 to vector<16x128xf32>
    %273 = arith.mulf %259, %272 : vector<16x128xf32>
    %274 = arith.addf %241, %273 : vector<16x128xf32>
    %275 = vector.broadcast %145 : f32 to vector<16x128xf32>
    %276 = arith.mulf %259, %275 : vector<16x128xf32>
    %277 = arith.addf %243, %276 : vector<16x128xf32>
    %278 = vector.broadcast %161 : f32 to vector<16x128xf32>
    %279 = arith.mulf %259, %278 : vector<16x128xf32>
    %280 = arith.addf %245, %279 : vector<16x128xf32>
    %281 = vector.broadcast %177 : f32 to vector<16x128xf32>
    %282 = arith.mulf %259, %281 : vector<16x128xf32>
    %283 = arith.addf %247, %282 : vector<16x128xf32>
    %284 = vector.broadcast %6 : f32 to vector<16x128xf32>
    %285 = arith.mulf %213, %284 : vector<16x128xf32>
    %286 = vector.broadcast %7 : f32 to vector<16x128xf32>
    %287 = arith.mulf %216, %286 : vector<16x128xf32>
    %288 = arith.addf %285, %287 : vector<16x128xf32>
    %289 = vector.broadcast %8 : f32 to vector<16x128xf32>
    %290 = arith.mulf %219, %289 : vector<16x128xf32>
    %291 = arith.addf %288, %290 : vector<16x128xf32>
    %292 = vector.broadcast %50 : f32 to vector<16x128xf32>
    %293 = arith.addf %291, %292 : vector<16x128xf32>
    %cst_7 = arith.constant 0.000000e+00 : f32
    %294 = vector.broadcast %cst_7 : f32 to vector<16x128xf32>
    %295 = arith.maximumf %293, %294 : vector<16x128xf32>
    %296 = vector.broadcast %66 : f32 to vector<16x128xf32>
    %297 = arith.mulf %295, %296 : vector<16x128xf32>
    %298 = arith.addf %262, %297 : vector<16x128xf32>
    %299 = vector.broadcast %82 : f32 to vector<16x128xf32>
    %300 = arith.mulf %295, %299 : vector<16x128xf32>
    %301 = arith.addf %265, %300 : vector<16x128xf32>
    %302 = vector.broadcast %98 : f32 to vector<16x128xf32>
    %303 = arith.mulf %295, %302 : vector<16x128xf32>
    %304 = arith.addf %268, %303 : vector<16x128xf32>
    %305 = vector.broadcast %114 : f32 to vector<16x128xf32>
    %306 = arith.mulf %295, %305 : vector<16x128xf32>
    %307 = arith.addf %271, %306 : vector<16x128xf32>
    %308 = vector.broadcast %130 : f32 to vector<16x128xf32>
    %309 = arith.mulf %295, %308 : vector<16x128xf32>
    %310 = arith.addf %274, %309 : vector<16x128xf32>
    %311 = vector.broadcast %146 : f32 to vector<16x128xf32>
    %312 = arith.mulf %295, %311 : vector<16x128xf32>
    %313 = arith.addf %277, %312 : vector<16x128xf32>
    %314 = vector.broadcast %162 : f32 to vector<16x128xf32>
    %315 = arith.mulf %295, %314 : vector<16x128xf32>
    %316 = arith.addf %280, %315 : vector<16x128xf32>
    %317 = vector.broadcast %178 : f32 to vector<16x128xf32>
    %318 = arith.mulf %295, %317 : vector<16x128xf32>
    %319 = arith.addf %283, %318 : vector<16x128xf32>
    %320 = vector.broadcast %9 : f32 to vector<16x128xf32>
    %321 = arith.mulf %213, %320 : vector<16x128xf32>
    %322 = vector.broadcast %10 : f32 to vector<16x128xf32>
    %323 = arith.mulf %216, %322 : vector<16x128xf32>
    %324 = arith.addf %321, %323 : vector<16x128xf32>
    %325 = vector.broadcast %11 : f32 to vector<16x128xf32>
    %326 = arith.mulf %219, %325 : vector<16x128xf32>
    %327 = arith.addf %324, %326 : vector<16x128xf32>
    %328 = vector.broadcast %51 : f32 to vector<16x128xf32>
    %329 = arith.addf %327, %328 : vector<16x128xf32>
    %cst_8 = arith.constant 0.000000e+00 : f32
    %330 = vector.broadcast %cst_8 : f32 to vector<16x128xf32>
    %331 = arith.maximumf %329, %330 : vector<16x128xf32>
    %332 = vector.broadcast %67 : f32 to vector<16x128xf32>
    %333 = arith.mulf %331, %332 : vector<16x128xf32>
    %334 = arith.addf %298, %333 : vector<16x128xf32>
    %335 = vector.broadcast %83 : f32 to vector<16x128xf32>
    %336 = arith.mulf %331, %335 : vector<16x128xf32>
    %337 = arith.addf %301, %336 : vector<16x128xf32>
    %338 = vector.broadcast %99 : f32 to vector<16x128xf32>
    %339 = arith.mulf %331, %338 : vector<16x128xf32>
    %340 = arith.addf %304, %339 : vector<16x128xf32>
    %341 = vector.broadcast %115 : f32 to vector<16x128xf32>
    %342 = arith.mulf %331, %341 : vector<16x128xf32>
    %343 = arith.addf %307, %342 : vector<16x128xf32>
    %344 = vector.broadcast %131 : f32 to vector<16x128xf32>
    %345 = arith.mulf %331, %344 : vector<16x128xf32>
    %346 = arith.addf %310, %345 : vector<16x128xf32>
    %347 = vector.broadcast %147 : f32 to vector<16x128xf32>
    %348 = arith.mulf %331, %347 : vector<16x128xf32>
    %349 = arith.addf %313, %348 : vector<16x128xf32>
    %350 = vector.broadcast %163 : f32 to vector<16x128xf32>
    %351 = arith.mulf %331, %350 : vector<16x128xf32>
    %352 = arith.addf %316, %351 : vector<16x128xf32>
    %353 = vector.broadcast %179 : f32 to vector<16x128xf32>
    %354 = arith.mulf %331, %353 : vector<16x128xf32>
    %355 = arith.addf %319, %354 : vector<16x128xf32>
    %356 = vector.broadcast %12 : f32 to vector<16x128xf32>
    %357 = arith.mulf %213, %356 : vector<16x128xf32>
    %358 = vector.broadcast %13 : f32 to vector<16x128xf32>
    %359 = arith.mulf %216, %358 : vector<16x128xf32>
    %360 = arith.addf %357, %359 : vector<16x128xf32>
    %361 = vector.broadcast %14 : f32 to vector<16x128xf32>
    %362 = arith.mulf %219, %361 : vector<16x128xf32>
    %363 = arith.addf %360, %362 : vector<16x128xf32>
    %364 = vector.broadcast %52 : f32 to vector<16x128xf32>
    %365 = arith.addf %363, %364 : vector<16x128xf32>
    %cst_9 = arith.constant 0.000000e+00 : f32
    %366 = vector.broadcast %cst_9 : f32 to vector<16x128xf32>
    %367 = arith.maximumf %365, %366 : vector<16x128xf32>
    %368 = vector.broadcast %68 : f32 to vector<16x128xf32>
    %369 = arith.mulf %367, %368 : vector<16x128xf32>
    %370 = arith.addf %334, %369 : vector<16x128xf32>
    %371 = vector.broadcast %84 : f32 to vector<16x128xf32>
    %372 = arith.mulf %367, %371 : vector<16x128xf32>
    %373 = arith.addf %337, %372 : vector<16x128xf32>
    %374 = vector.broadcast %100 : f32 to vector<16x128xf32>
    %375 = arith.mulf %367, %374 : vector<16x128xf32>
    %376 = arith.addf %340, %375 : vector<16x128xf32>
    %377 = vector.broadcast %116 : f32 to vector<16x128xf32>
    %378 = arith.mulf %367, %377 : vector<16x128xf32>
    %379 = arith.addf %343, %378 : vector<16x128xf32>
    %380 = vector.broadcast %132 : f32 to vector<16x128xf32>
    %381 = arith.mulf %367, %380 : vector<16x128xf32>
    %382 = arith.addf %346, %381 : vector<16x128xf32>
    %383 = vector.broadcast %148 : f32 to vector<16x128xf32>
    %384 = arith.mulf %367, %383 : vector<16x128xf32>
    %385 = arith.addf %349, %384 : vector<16x128xf32>
    %386 = vector.broadcast %164 : f32 to vector<16x128xf32>
    %387 = arith.mulf %367, %386 : vector<16x128xf32>
    %388 = arith.addf %352, %387 : vector<16x128xf32>
    %389 = vector.broadcast %180 : f32 to vector<16x128xf32>
    %390 = arith.mulf %367, %389 : vector<16x128xf32>
    %391 = arith.addf %355, %390 : vector<16x128xf32>
    %392 = vector.broadcast %15 : f32 to vector<16x128xf32>
    %393 = arith.mulf %213, %392 : vector<16x128xf32>
    %394 = vector.broadcast %16 : f32 to vector<16x128xf32>
    %395 = arith.mulf %216, %394 : vector<16x128xf32>
    %396 = arith.addf %393, %395 : vector<16x128xf32>
    %397 = vector.broadcast %17 : f32 to vector<16x128xf32>
    %398 = arith.mulf %219, %397 : vector<16x128xf32>
    %399 = arith.addf %396, %398 : vector<16x128xf32>
    %400 = vector.broadcast %53 : f32 to vector<16x128xf32>
    %401 = arith.addf %399, %400 : vector<16x128xf32>
    %cst_10 = arith.constant 0.000000e+00 : f32
    %402 = vector.broadcast %cst_10 : f32 to vector<16x128xf32>
    %403 = arith.maximumf %401, %402 : vector<16x128xf32>
    %404 = vector.broadcast %69 : f32 to vector<16x128xf32>
    %405 = arith.mulf %403, %404 : vector<16x128xf32>
    %406 = arith.addf %370, %405 : vector<16x128xf32>
    %407 = vector.broadcast %85 : f32 to vector<16x128xf32>
    %408 = arith.mulf %403, %407 : vector<16x128xf32>
    %409 = arith.addf %373, %408 : vector<16x128xf32>
    %410 = vector.broadcast %101 : f32 to vector<16x128xf32>
    %411 = arith.mulf %403, %410 : vector<16x128xf32>
    %412 = arith.addf %376, %411 : vector<16x128xf32>
    %413 = vector.broadcast %117 : f32 to vector<16x128xf32>
    %414 = arith.mulf %403, %413 : vector<16x128xf32>
    %415 = arith.addf %379, %414 : vector<16x128xf32>
    %416 = vector.broadcast %133 : f32 to vector<16x128xf32>
    %417 = arith.mulf %403, %416 : vector<16x128xf32>
    %418 = arith.addf %382, %417 : vector<16x128xf32>
    %419 = vector.broadcast %149 : f32 to vector<16x128xf32>
    %420 = arith.mulf %403, %419 : vector<16x128xf32>
    %421 = arith.addf %385, %420 : vector<16x128xf32>
    %422 = vector.broadcast %165 : f32 to vector<16x128xf32>
    %423 = arith.mulf %403, %422 : vector<16x128xf32>
    %424 = arith.addf %388, %423 : vector<16x128xf32>
    %425 = vector.broadcast %181 : f32 to vector<16x128xf32>
    %426 = arith.mulf %403, %425 : vector<16x128xf32>
    %427 = arith.addf %391, %426 : vector<16x128xf32>
    %428 = vector.broadcast %18 : f32 to vector<16x128xf32>
    %429 = arith.mulf %213, %428 : vector<16x128xf32>
    %430 = vector.broadcast %19 : f32 to vector<16x128xf32>
    %431 = arith.mulf %216, %430 : vector<16x128xf32>
    %432 = arith.addf %429, %431 : vector<16x128xf32>
    %433 = vector.broadcast %20 : f32 to vector<16x128xf32>
    %434 = arith.mulf %219, %433 : vector<16x128xf32>
    %435 = arith.addf %432, %434 : vector<16x128xf32>
    %436 = vector.broadcast %54 : f32 to vector<16x128xf32>
    %437 = arith.addf %435, %436 : vector<16x128xf32>
    %cst_11 = arith.constant 0.000000e+00 : f32
    %438 = vector.broadcast %cst_11 : f32 to vector<16x128xf32>
    %439 = arith.maximumf %437, %438 : vector<16x128xf32>
    %440 = vector.broadcast %70 : f32 to vector<16x128xf32>
    %441 = arith.mulf %439, %440 : vector<16x128xf32>
    %442 = arith.addf %406, %441 : vector<16x128xf32>
    %443 = vector.broadcast %86 : f32 to vector<16x128xf32>
    %444 = arith.mulf %439, %443 : vector<16x128xf32>
    %445 = arith.addf %409, %444 : vector<16x128xf32>
    %446 = vector.broadcast %102 : f32 to vector<16x128xf32>
    %447 = arith.mulf %439, %446 : vector<16x128xf32>
    %448 = arith.addf %412, %447 : vector<16x128xf32>
    %449 = vector.broadcast %118 : f32 to vector<16x128xf32>
    %450 = arith.mulf %439, %449 : vector<16x128xf32>
    %451 = arith.addf %415, %450 : vector<16x128xf32>
    %452 = vector.broadcast %134 : f32 to vector<16x128xf32>
    %453 = arith.mulf %439, %452 : vector<16x128xf32>
    %454 = arith.addf %418, %453 : vector<16x128xf32>
    %455 = vector.broadcast %150 : f32 to vector<16x128xf32>
    %456 = arith.mulf %439, %455 : vector<16x128xf32>
    %457 = arith.addf %421, %456 : vector<16x128xf32>
    %458 = vector.broadcast %166 : f32 to vector<16x128xf32>
    %459 = arith.mulf %439, %458 : vector<16x128xf32>
    %460 = arith.addf %424, %459 : vector<16x128xf32>
    %461 = vector.broadcast %182 : f32 to vector<16x128xf32>
    %462 = arith.mulf %439, %461 : vector<16x128xf32>
    %463 = arith.addf %427, %462 : vector<16x128xf32>
    %464 = vector.broadcast %21 : f32 to vector<16x128xf32>
    %465 = arith.mulf %213, %464 : vector<16x128xf32>
    %466 = vector.broadcast %22 : f32 to vector<16x128xf32>
    %467 = arith.mulf %216, %466 : vector<16x128xf32>
    %468 = arith.addf %465, %467 : vector<16x128xf32>
    %469 = vector.broadcast %23 : f32 to vector<16x128xf32>
    %470 = arith.mulf %219, %469 : vector<16x128xf32>
    %471 = arith.addf %468, %470 : vector<16x128xf32>
    %472 = vector.broadcast %55 : f32 to vector<16x128xf32>
    %473 = arith.addf %471, %472 : vector<16x128xf32>
    %cst_12 = arith.constant 0.000000e+00 : f32
    %474 = vector.broadcast %cst_12 : f32 to vector<16x128xf32>
    %475 = arith.maximumf %473, %474 : vector<16x128xf32>
    %476 = vector.broadcast %71 : f32 to vector<16x128xf32>
    %477 = arith.mulf %475, %476 : vector<16x128xf32>
    %478 = arith.addf %442, %477 : vector<16x128xf32>
    %479 = vector.broadcast %87 : f32 to vector<16x128xf32>
    %480 = arith.mulf %475, %479 : vector<16x128xf32>
    %481 = arith.addf %445, %480 : vector<16x128xf32>
    %482 = vector.broadcast %103 : f32 to vector<16x128xf32>
    %483 = arith.mulf %475, %482 : vector<16x128xf32>
    %484 = arith.addf %448, %483 : vector<16x128xf32>
    %485 = vector.broadcast %119 : f32 to vector<16x128xf32>
    %486 = arith.mulf %475, %485 : vector<16x128xf32>
    %487 = arith.addf %451, %486 : vector<16x128xf32>
    %488 = vector.broadcast %135 : f32 to vector<16x128xf32>
    %489 = arith.mulf %475, %488 : vector<16x128xf32>
    %490 = arith.addf %454, %489 : vector<16x128xf32>
    %491 = vector.broadcast %151 : f32 to vector<16x128xf32>
    %492 = arith.mulf %475, %491 : vector<16x128xf32>
    %493 = arith.addf %457, %492 : vector<16x128xf32>
    %494 = vector.broadcast %167 : f32 to vector<16x128xf32>
    %495 = arith.mulf %475, %494 : vector<16x128xf32>
    %496 = arith.addf %460, %495 : vector<16x128xf32>
    %497 = vector.broadcast %183 : f32 to vector<16x128xf32>
    %498 = arith.mulf %475, %497 : vector<16x128xf32>
    %499 = arith.addf %463, %498 : vector<16x128xf32>
    %500 = vector.broadcast %24 : f32 to vector<16x128xf32>
    %501 = arith.mulf %213, %500 : vector<16x128xf32>
    %502 = vector.broadcast %25 : f32 to vector<16x128xf32>
    %503 = arith.mulf %216, %502 : vector<16x128xf32>
    %504 = arith.addf %501, %503 : vector<16x128xf32>
    %505 = vector.broadcast %26 : f32 to vector<16x128xf32>
    %506 = arith.mulf %219, %505 : vector<16x128xf32>
    %507 = arith.addf %504, %506 : vector<16x128xf32>
    %508 = vector.broadcast %56 : f32 to vector<16x128xf32>
    %509 = arith.addf %507, %508 : vector<16x128xf32>
    %cst_13 = arith.constant 0.000000e+00 : f32
    %510 = vector.broadcast %cst_13 : f32 to vector<16x128xf32>
    %511 = arith.maximumf %509, %510 : vector<16x128xf32>
    %512 = vector.broadcast %72 : f32 to vector<16x128xf32>
    %513 = arith.mulf %511, %512 : vector<16x128xf32>
    %514 = arith.addf %478, %513 : vector<16x128xf32>
    %515 = vector.broadcast %88 : f32 to vector<16x128xf32>
    %516 = arith.mulf %511, %515 : vector<16x128xf32>
    %517 = arith.addf %481, %516 : vector<16x128xf32>
    %518 = vector.broadcast %104 : f32 to vector<16x128xf32>
    %519 = arith.mulf %511, %518 : vector<16x128xf32>
    %520 = arith.addf %484, %519 : vector<16x128xf32>
    %521 = vector.broadcast %120 : f32 to vector<16x128xf32>
    %522 = arith.mulf %511, %521 : vector<16x128xf32>
    %523 = arith.addf %487, %522 : vector<16x128xf32>
    %524 = vector.broadcast %136 : f32 to vector<16x128xf32>
    %525 = arith.mulf %511, %524 : vector<16x128xf32>
    %526 = arith.addf %490, %525 : vector<16x128xf32>
    %527 = vector.broadcast %152 : f32 to vector<16x128xf32>
    %528 = arith.mulf %511, %527 : vector<16x128xf32>
    %529 = arith.addf %493, %528 : vector<16x128xf32>
    %530 = vector.broadcast %168 : f32 to vector<16x128xf32>
    %531 = arith.mulf %511, %530 : vector<16x128xf32>
    %532 = arith.addf %496, %531 : vector<16x128xf32>
    %533 = vector.broadcast %184 : f32 to vector<16x128xf32>
    %534 = arith.mulf %511, %533 : vector<16x128xf32>
    %535 = arith.addf %499, %534 : vector<16x128xf32>
    %536 = vector.broadcast %27 : f32 to vector<16x128xf32>
    %537 = arith.mulf %213, %536 : vector<16x128xf32>
    %538 = vector.broadcast %28 : f32 to vector<16x128xf32>
    %539 = arith.mulf %216, %538 : vector<16x128xf32>
    %540 = arith.addf %537, %539 : vector<16x128xf32>
    %541 = vector.broadcast %29 : f32 to vector<16x128xf32>
    %542 = arith.mulf %219, %541 : vector<16x128xf32>
    %543 = arith.addf %540, %542 : vector<16x128xf32>
    %544 = vector.broadcast %57 : f32 to vector<16x128xf32>
    %545 = arith.addf %543, %544 : vector<16x128xf32>
    %cst_14 = arith.constant 0.000000e+00 : f32
    %546 = vector.broadcast %cst_14 : f32 to vector<16x128xf32>
    %547 = arith.maximumf %545, %546 : vector<16x128xf32>
    %548 = vector.broadcast %73 : f32 to vector<16x128xf32>
    %549 = arith.mulf %547, %548 : vector<16x128xf32>
    %550 = arith.addf %514, %549 : vector<16x128xf32>
    %551 = vector.broadcast %89 : f32 to vector<16x128xf32>
    %552 = arith.mulf %547, %551 : vector<16x128xf32>
    %553 = arith.addf %517, %552 : vector<16x128xf32>
    %554 = vector.broadcast %105 : f32 to vector<16x128xf32>
    %555 = arith.mulf %547, %554 : vector<16x128xf32>
    %556 = arith.addf %520, %555 : vector<16x128xf32>
    %557 = vector.broadcast %121 : f32 to vector<16x128xf32>
    %558 = arith.mulf %547, %557 : vector<16x128xf32>
    %559 = arith.addf %523, %558 : vector<16x128xf32>
    %560 = vector.broadcast %137 : f32 to vector<16x128xf32>
    %561 = arith.mulf %547, %560 : vector<16x128xf32>
    %562 = arith.addf %526, %561 : vector<16x128xf32>
    %563 = vector.broadcast %153 : f32 to vector<16x128xf32>
    %564 = arith.mulf %547, %563 : vector<16x128xf32>
    %565 = arith.addf %529, %564 : vector<16x128xf32>
    %566 = vector.broadcast %169 : f32 to vector<16x128xf32>
    %567 = arith.mulf %547, %566 : vector<16x128xf32>
    %568 = arith.addf %532, %567 : vector<16x128xf32>
    %569 = vector.broadcast %185 : f32 to vector<16x128xf32>
    %570 = arith.mulf %547, %569 : vector<16x128xf32>
    %571 = arith.addf %535, %570 : vector<16x128xf32>
    %572 = vector.broadcast %30 : f32 to vector<16x128xf32>
    %573 = arith.mulf %213, %572 : vector<16x128xf32>
    %574 = vector.broadcast %31 : f32 to vector<16x128xf32>
    %575 = arith.mulf %216, %574 : vector<16x128xf32>
    %576 = arith.addf %573, %575 : vector<16x128xf32>
    %577 = vector.broadcast %32 : f32 to vector<16x128xf32>
    %578 = arith.mulf %219, %577 : vector<16x128xf32>
    %579 = arith.addf %576, %578 : vector<16x128xf32>
    %580 = vector.broadcast %58 : f32 to vector<16x128xf32>
    %581 = arith.addf %579, %580 : vector<16x128xf32>
    %cst_15 = arith.constant 0.000000e+00 : f32
    %582 = vector.broadcast %cst_15 : f32 to vector<16x128xf32>
    %583 = arith.maximumf %581, %582 : vector<16x128xf32>
    %584 = vector.broadcast %74 : f32 to vector<16x128xf32>
    %585 = arith.mulf %583, %584 : vector<16x128xf32>
    %586 = arith.addf %550, %585 : vector<16x128xf32>
    %587 = vector.broadcast %90 : f32 to vector<16x128xf32>
    %588 = arith.mulf %583, %587 : vector<16x128xf32>
    %589 = arith.addf %553, %588 : vector<16x128xf32>
    %590 = vector.broadcast %106 : f32 to vector<16x128xf32>
    %591 = arith.mulf %583, %590 : vector<16x128xf32>
    %592 = arith.addf %556, %591 : vector<16x128xf32>
    %593 = vector.broadcast %122 : f32 to vector<16x128xf32>
    %594 = arith.mulf %583, %593 : vector<16x128xf32>
    %595 = arith.addf %559, %594 : vector<16x128xf32>
    %596 = vector.broadcast %138 : f32 to vector<16x128xf32>
    %597 = arith.mulf %583, %596 : vector<16x128xf32>
    %598 = arith.addf %562, %597 : vector<16x128xf32>
    %599 = vector.broadcast %154 : f32 to vector<16x128xf32>
    %600 = arith.mulf %583, %599 : vector<16x128xf32>
    %601 = arith.addf %565, %600 : vector<16x128xf32>
    %602 = vector.broadcast %170 : f32 to vector<16x128xf32>
    %603 = arith.mulf %583, %602 : vector<16x128xf32>
    %604 = arith.addf %568, %603 : vector<16x128xf32>
    %605 = vector.broadcast %186 : f32 to vector<16x128xf32>
    %606 = arith.mulf %583, %605 : vector<16x128xf32>
    %607 = arith.addf %571, %606 : vector<16x128xf32>
    %608 = vector.broadcast %33 : f32 to vector<16x128xf32>
    %609 = arith.mulf %213, %608 : vector<16x128xf32>
    %610 = vector.broadcast %34 : f32 to vector<16x128xf32>
    %611 = arith.mulf %216, %610 : vector<16x128xf32>
    %612 = arith.addf %609, %611 : vector<16x128xf32>
    %613 = vector.broadcast %35 : f32 to vector<16x128xf32>
    %614 = arith.mulf %219, %613 : vector<16x128xf32>
    %615 = arith.addf %612, %614 : vector<16x128xf32>
    %616 = vector.broadcast %59 : f32 to vector<16x128xf32>
    %617 = arith.addf %615, %616 : vector<16x128xf32>
    %cst_16 = arith.constant 0.000000e+00 : f32
    %618 = vector.broadcast %cst_16 : f32 to vector<16x128xf32>
    %619 = arith.maximumf %617, %618 : vector<16x128xf32>
    %620 = vector.broadcast %75 : f32 to vector<16x128xf32>
    %621 = arith.mulf %619, %620 : vector<16x128xf32>
    %622 = arith.addf %586, %621 : vector<16x128xf32>
    %623 = vector.broadcast %91 : f32 to vector<16x128xf32>
    %624 = arith.mulf %619, %623 : vector<16x128xf32>
    %625 = arith.addf %589, %624 : vector<16x128xf32>
    %626 = vector.broadcast %107 : f32 to vector<16x128xf32>
    %627 = arith.mulf %619, %626 : vector<16x128xf32>
    %628 = arith.addf %592, %627 : vector<16x128xf32>
    %629 = vector.broadcast %123 : f32 to vector<16x128xf32>
    %630 = arith.mulf %619, %629 : vector<16x128xf32>
    %631 = arith.addf %595, %630 : vector<16x128xf32>
    %632 = vector.broadcast %139 : f32 to vector<16x128xf32>
    %633 = arith.mulf %619, %632 : vector<16x128xf32>
    %634 = arith.addf %598, %633 : vector<16x128xf32>
    %635 = vector.broadcast %155 : f32 to vector<16x128xf32>
    %636 = arith.mulf %619, %635 : vector<16x128xf32>
    %637 = arith.addf %601, %636 : vector<16x128xf32>
    %638 = vector.broadcast %171 : f32 to vector<16x128xf32>
    %639 = arith.mulf %619, %638 : vector<16x128xf32>
    %640 = arith.addf %604, %639 : vector<16x128xf32>
    %641 = vector.broadcast %187 : f32 to vector<16x128xf32>
    %642 = arith.mulf %619, %641 : vector<16x128xf32>
    %643 = arith.addf %607, %642 : vector<16x128xf32>
    %644 = vector.broadcast %36 : f32 to vector<16x128xf32>
    %645 = arith.mulf %213, %644 : vector<16x128xf32>
    %646 = vector.broadcast %37 : f32 to vector<16x128xf32>
    %647 = arith.mulf %216, %646 : vector<16x128xf32>
    %648 = arith.addf %645, %647 : vector<16x128xf32>
    %649 = vector.broadcast %38 : f32 to vector<16x128xf32>
    %650 = arith.mulf %219, %649 : vector<16x128xf32>
    %651 = arith.addf %648, %650 : vector<16x128xf32>
    %652 = vector.broadcast %60 : f32 to vector<16x128xf32>
    %653 = arith.addf %651, %652 : vector<16x128xf32>
    %cst_17 = arith.constant 0.000000e+00 : f32
    %654 = vector.broadcast %cst_17 : f32 to vector<16x128xf32>
    %655 = arith.maximumf %653, %654 : vector<16x128xf32>
    %656 = vector.broadcast %76 : f32 to vector<16x128xf32>
    %657 = arith.mulf %655, %656 : vector<16x128xf32>
    %658 = arith.addf %622, %657 : vector<16x128xf32>
    %659 = vector.broadcast %92 : f32 to vector<16x128xf32>
    %660 = arith.mulf %655, %659 : vector<16x128xf32>
    %661 = arith.addf %625, %660 : vector<16x128xf32>
    %662 = vector.broadcast %108 : f32 to vector<16x128xf32>
    %663 = arith.mulf %655, %662 : vector<16x128xf32>
    %664 = arith.addf %628, %663 : vector<16x128xf32>
    %665 = vector.broadcast %124 : f32 to vector<16x128xf32>
    %666 = arith.mulf %655, %665 : vector<16x128xf32>
    %667 = arith.addf %631, %666 : vector<16x128xf32>
    %668 = vector.broadcast %140 : f32 to vector<16x128xf32>
    %669 = arith.mulf %655, %668 : vector<16x128xf32>
    %670 = arith.addf %634, %669 : vector<16x128xf32>
    %671 = vector.broadcast %156 : f32 to vector<16x128xf32>
    %672 = arith.mulf %655, %671 : vector<16x128xf32>
    %673 = arith.addf %637, %672 : vector<16x128xf32>
    %674 = vector.broadcast %172 : f32 to vector<16x128xf32>
    %675 = arith.mulf %655, %674 : vector<16x128xf32>
    %676 = arith.addf %640, %675 : vector<16x128xf32>
    %677 = vector.broadcast %188 : f32 to vector<16x128xf32>
    %678 = arith.mulf %655, %677 : vector<16x128xf32>
    %679 = arith.addf %643, %678 : vector<16x128xf32>
    %680 = vector.broadcast %39 : f32 to vector<16x128xf32>
    %681 = arith.mulf %213, %680 : vector<16x128xf32>
    %682 = vector.broadcast %40 : f32 to vector<16x128xf32>
    %683 = arith.mulf %216, %682 : vector<16x128xf32>
    %684 = arith.addf %681, %683 : vector<16x128xf32>
    %685 = vector.broadcast %41 : f32 to vector<16x128xf32>
    %686 = arith.mulf %219, %685 : vector<16x128xf32>
    %687 = arith.addf %684, %686 : vector<16x128xf32>
    %688 = vector.broadcast %61 : f32 to vector<16x128xf32>
    %689 = arith.addf %687, %688 : vector<16x128xf32>
    %cst_18 = arith.constant 0.000000e+00 : f32
    %690 = vector.broadcast %cst_18 : f32 to vector<16x128xf32>
    %691 = arith.maximumf %689, %690 : vector<16x128xf32>
    %692 = vector.broadcast %77 : f32 to vector<16x128xf32>
    %693 = arith.mulf %691, %692 : vector<16x128xf32>
    %694 = arith.addf %658, %693 : vector<16x128xf32>
    %695 = vector.broadcast %93 : f32 to vector<16x128xf32>
    %696 = arith.mulf %691, %695 : vector<16x128xf32>
    %697 = arith.addf %661, %696 : vector<16x128xf32>
    %698 = vector.broadcast %109 : f32 to vector<16x128xf32>
    %699 = arith.mulf %691, %698 : vector<16x128xf32>
    %700 = arith.addf %664, %699 : vector<16x128xf32>
    %701 = vector.broadcast %125 : f32 to vector<16x128xf32>
    %702 = arith.mulf %691, %701 : vector<16x128xf32>
    %703 = arith.addf %667, %702 : vector<16x128xf32>
    %704 = vector.broadcast %141 : f32 to vector<16x128xf32>
    %705 = arith.mulf %691, %704 : vector<16x128xf32>
    %706 = arith.addf %670, %705 : vector<16x128xf32>
    %707 = vector.broadcast %157 : f32 to vector<16x128xf32>
    %708 = arith.mulf %691, %707 : vector<16x128xf32>
    %709 = arith.addf %673, %708 : vector<16x128xf32>
    %710 = vector.broadcast %173 : f32 to vector<16x128xf32>
    %711 = arith.mulf %691, %710 : vector<16x128xf32>
    %712 = arith.addf %676, %711 : vector<16x128xf32>
    %713 = vector.broadcast %189 : f32 to vector<16x128xf32>
    %714 = arith.mulf %691, %713 : vector<16x128xf32>
    %715 = arith.addf %679, %714 : vector<16x128xf32>
    %716 = vector.broadcast %42 : f32 to vector<16x128xf32>
    %717 = arith.mulf %213, %716 : vector<16x128xf32>
    %718 = vector.broadcast %43 : f32 to vector<16x128xf32>
    %719 = arith.mulf %216, %718 : vector<16x128xf32>
    %720 = arith.addf %717, %719 : vector<16x128xf32>
    %721 = vector.broadcast %44 : f32 to vector<16x128xf32>
    %722 = arith.mulf %219, %721 : vector<16x128xf32>
    %723 = arith.addf %720, %722 : vector<16x128xf32>
    %724 = vector.broadcast %62 : f32 to vector<16x128xf32>
    %725 = arith.addf %723, %724 : vector<16x128xf32>
    %cst_19 = arith.constant 0.000000e+00 : f32
    %726 = vector.broadcast %cst_19 : f32 to vector<16x128xf32>
    %727 = arith.maximumf %725, %726 : vector<16x128xf32>
    %728 = vector.broadcast %78 : f32 to vector<16x128xf32>
    %729 = arith.mulf %727, %728 : vector<16x128xf32>
    %730 = arith.addf %694, %729 : vector<16x128xf32>
    %731 = vector.broadcast %94 : f32 to vector<16x128xf32>
    %732 = arith.mulf %727, %731 : vector<16x128xf32>
    %733 = arith.addf %697, %732 : vector<16x128xf32>
    %734 = vector.broadcast %110 : f32 to vector<16x128xf32>
    %735 = arith.mulf %727, %734 : vector<16x128xf32>
    %736 = arith.addf %700, %735 : vector<16x128xf32>
    %737 = vector.broadcast %126 : f32 to vector<16x128xf32>
    %738 = arith.mulf %727, %737 : vector<16x128xf32>
    %739 = arith.addf %703, %738 : vector<16x128xf32>
    %740 = vector.broadcast %142 : f32 to vector<16x128xf32>
    %741 = arith.mulf %727, %740 : vector<16x128xf32>
    %742 = arith.addf %706, %741 : vector<16x128xf32>
    %743 = vector.broadcast %158 : f32 to vector<16x128xf32>
    %744 = arith.mulf %727, %743 : vector<16x128xf32>
    %745 = arith.addf %709, %744 : vector<16x128xf32>
    %746 = vector.broadcast %174 : f32 to vector<16x128xf32>
    %747 = arith.mulf %727, %746 : vector<16x128xf32>
    %748 = arith.addf %712, %747 : vector<16x128xf32>
    %749 = vector.broadcast %190 : f32 to vector<16x128xf32>
    %750 = arith.mulf %727, %749 : vector<16x128xf32>
    %751 = arith.addf %715, %750 : vector<16x128xf32>
    %752 = vector.broadcast %45 : f32 to vector<16x128xf32>
    %753 = arith.mulf %213, %752 : vector<16x128xf32>
    %754 = vector.broadcast %46 : f32 to vector<16x128xf32>
    %755 = arith.mulf %216, %754 : vector<16x128xf32>
    %756 = arith.addf %753, %755 : vector<16x128xf32>
    %757 = vector.broadcast %47 : f32 to vector<16x128xf32>
    %758 = arith.mulf %219, %757 : vector<16x128xf32>
    %759 = arith.addf %756, %758 : vector<16x128xf32>
    %760 = vector.broadcast %63 : f32 to vector<16x128xf32>
    %761 = arith.addf %759, %760 : vector<16x128xf32>
    %cst_20 = arith.constant 0.000000e+00 : f32
    %762 = vector.broadcast %cst_20 : f32 to vector<16x128xf32>
    %763 = arith.maximumf %761, %762 : vector<16x128xf32>
    %764 = vector.broadcast %79 : f32 to vector<16x128xf32>
    %765 = arith.mulf %763, %764 : vector<16x128xf32>
    %766 = arith.addf %730, %765 : vector<16x128xf32>
    %767 = vector.broadcast %95 : f32 to vector<16x128xf32>
    %768 = arith.mulf %763, %767 : vector<16x128xf32>
    %769 = arith.addf %733, %768 : vector<16x128xf32>
    %770 = vector.broadcast %111 : f32 to vector<16x128xf32>
    %771 = arith.mulf %763, %770 : vector<16x128xf32>
    %772 = arith.addf %736, %771 : vector<16x128xf32>
    %773 = vector.broadcast %127 : f32 to vector<16x128xf32>
    %774 = arith.mulf %763, %773 : vector<16x128xf32>
    %775 = arith.addf %739, %774 : vector<16x128xf32>
    %776 = vector.broadcast %143 : f32 to vector<16x128xf32>
    %777 = arith.mulf %763, %776 : vector<16x128xf32>
    %778 = arith.addf %742, %777 : vector<16x128xf32>
    %779 = vector.broadcast %159 : f32 to vector<16x128xf32>
    %780 = arith.mulf %763, %779 : vector<16x128xf32>
    %781 = arith.addf %745, %780 : vector<16x128xf32>
    %782 = vector.broadcast %175 : f32 to vector<16x128xf32>
    %783 = arith.mulf %763, %782 : vector<16x128xf32>
    %784 = arith.addf %748, %783 : vector<16x128xf32>
    %785 = vector.broadcast %191 : f32 to vector<16x128xf32>
    %786 = arith.mulf %763, %785 : vector<16x128xf32>
    %787 = arith.addf %751, %786 : vector<16x128xf32>
    %788 = vector.broadcast %192 : f32 to vector<16x128xf32>
    %789 = arith.addf %766, %788 : vector<16x128xf32>
    %cst_21 = arith.constant 0.000000e+00 : f32
    %790 = vector.broadcast %cst_21 : f32 to vector<16x128xf32>
    %791 = arith.maximumf %789, %790 : vector<16x128xf32>
    %792 = vector.broadcast %200 : f32 to vector<16x128xf32>
    %793 = arith.mulf %791, %792 : vector<16x128xf32>
    %794 = vector.broadcast %193 : f32 to vector<16x128xf32>
    %795 = arith.addf %769, %794 : vector<16x128xf32>
    %cst_22 = arith.constant 0.000000e+00 : f32
    %796 = vector.broadcast %cst_22 : f32 to vector<16x128xf32>
    %797 = arith.maximumf %795, %796 : vector<16x128xf32>
    %798 = vector.broadcast %201 : f32 to vector<16x128xf32>
    %799 = arith.mulf %797, %798 : vector<16x128xf32>
    %800 = arith.addf %793, %799 : vector<16x128xf32>
    %801 = vector.broadcast %194 : f32 to vector<16x128xf32>
    %802 = arith.addf %772, %801 : vector<16x128xf32>
    %cst_23 = arith.constant 0.000000e+00 : f32
    %803 = vector.broadcast %cst_23 : f32 to vector<16x128xf32>
    %804 = arith.maximumf %802, %803 : vector<16x128xf32>
    %805 = vector.broadcast %202 : f32 to vector<16x128xf32>
    %806 = arith.mulf %804, %805 : vector<16x128xf32>
    %807 = arith.addf %800, %806 : vector<16x128xf32>
    %808 = vector.broadcast %195 : f32 to vector<16x128xf32>
    %809 = arith.addf %775, %808 : vector<16x128xf32>
    %cst_24 = arith.constant 0.000000e+00 : f32
    %810 = vector.broadcast %cst_24 : f32 to vector<16x128xf32>
    %811 = arith.maximumf %809, %810 : vector<16x128xf32>
    %812 = vector.broadcast %203 : f32 to vector<16x128xf32>
    %813 = arith.mulf %811, %812 : vector<16x128xf32>
    %814 = arith.addf %807, %813 : vector<16x128xf32>
    %815 = vector.broadcast %196 : f32 to vector<16x128xf32>
    %816 = arith.addf %778, %815 : vector<16x128xf32>
    %cst_25 = arith.constant 0.000000e+00 : f32
    %817 = vector.broadcast %cst_25 : f32 to vector<16x128xf32>
    %818 = arith.maximumf %816, %817 : vector<16x128xf32>
    %819 = vector.broadcast %204 : f32 to vector<16x128xf32>
    %820 = arith.mulf %818, %819 : vector<16x128xf32>
    %821 = arith.addf %814, %820 : vector<16x128xf32>
    %822 = vector.broadcast %197 : f32 to vector<16x128xf32>
    %823 = arith.addf %781, %822 : vector<16x128xf32>
    %cst_26 = arith.constant 0.000000e+00 : f32
    %824 = vector.broadcast %cst_26 : f32 to vector<16x128xf32>
    %825 = arith.maximumf %823, %824 : vector<16x128xf32>
    %826 = vector.broadcast %205 : f32 to vector<16x128xf32>
    %827 = arith.mulf %825, %826 : vector<16x128xf32>
    %828 = arith.addf %821, %827 : vector<16x128xf32>
    %829 = vector.broadcast %198 : f32 to vector<16x128xf32>
    %830 = arith.addf %784, %829 : vector<16x128xf32>
    %cst_27 = arith.constant 0.000000e+00 : f32
    %831 = vector.broadcast %cst_27 : f32 to vector<16x128xf32>
    %832 = arith.maximumf %830, %831 : vector<16x128xf32>
    %833 = vector.broadcast %206 : f32 to vector<16x128xf32>
    %834 = arith.mulf %832, %833 : vector<16x128xf32>
    %835 = arith.addf %828, %834 : vector<16x128xf32>
    %836 = vector.broadcast %199 : f32 to vector<16x128xf32>
    %837 = arith.addf %787, %836 : vector<16x128xf32>
    %cst_28 = arith.constant 0.000000e+00 : f32
    %838 = vector.broadcast %cst_28 : f32 to vector<16x128xf32>
    %839 = arith.maximumf %837, %838 : vector<16x128xf32>
    %840 = vector.broadcast %207 : f32 to vector<16x128xf32>
    %841 = arith.mulf %839, %840 : vector<16x128xf32>
    %842 = arith.addf %835, %841 : vector<16x128xf32>
    %843 = vector.broadcast %208 : f32 to vector<16x128xf32>
    %844 = arith.addf %842, %843 : vector<16x128xf32>
    %845 = arith.index_cast %210 : i32 to index
    %c0_29 = arith.constant 0 : index
    %846 = vector.load %arg3[%845, %c0_29] : memref<16x128xf32, #tpu.memory_space<vmem>>, vector<16x128xf32>
    tpu.vector_store %arg3[%845, %c0_29], %844 {strides = array<i32>} : memref<16x128xf32, #tpu.memory_space<vmem>>, vector<16x128xf32>,
    %c1_i32 = arith.constant 1 : i32
    return
  }
  func.func @transform_0(%arg0: i32) -> i32 {
    %c0_i32 = arith.constant 0 : i32
    %c0_i32_0 = arith.constant 0 : i32
    return %c0_i32 : i32
  }
  func.func @transform_1(%arg0: i32) -> (i32, i32, i32) {
    %c0_i32 = arith.constant 0 : i32
    %c0_i32_0 = arith.constant 0 : i32
    %c0_i32_1 = arith.constant 0 : i32
    return %c0_i32, %arg0, %c0_i32_0 : i32, i32, i32
  }
  func.func @transform_2(%arg0: i32) -> (i32, i32) {
    %c0_i32 = arith.constant 0 : i32
    %c0_i32_0 = arith.constant 0 : i32
    return %arg0, %c0_i32 : i32, i32
  }
}

</mosaic_0001>

<llo_original>
// kernel: tpu_custom_call.1
$region0: #{tpu_custom_call.1}
  #allocation0 [shape = 'u32[]', space=smem, size = 0x4, offset = 0x4, fixed_abs, tag = 'smem constant byte address 0x4 - core index']
  #allocation1 [shape = 'u32[144,128]{1,0:T(1,128)}', space=vmem, size = 0x12000, scoped, tag = 'internal scratch']
  %s0 = inlined_call_operand.hbm [shape: f32[216], index: 0, kind: input, shape index: {}]
  %s1 = inlined_call_operand.hbm [shape: f32[3,16,128], index: 1, kind: input, shape index: {}]
  %s2 = inlined_call_operand.hbm [shape: f32[16,128], index: 2, kind: output, shape index: {}]
  %s3 = sld [smem:[#allocation0]]
  $region26: #{tpu_custom_call.1} parent=0
    _
  %s5 = ssub.s32 1, %s3
  %s6 = scalar_select 0, %s5, %s3
  $region1: #{tpu_custom_call.1} parent=0
    #allocation2 [shape = 'u8[1024]{0}', space=smem, size = 0x400, scoped, tag = 'input window, operand 0, single buffered']
    #allocation3 [shape = 's32[1]{0}', space=sflag, size = 0x4, scoped, tag = 'scoped memory for tpu_custom_call.1']
    #allocation4 [shape = 's32[1]{0}', space=sflag, size = 0x4, scoped, tag = 'scoped memory for tpu_custom_call.1']
    #allocation5 [shape = 's32[1]{0}', space=sflag, size = 0x4, scoped, tag = 'scoped memory for tpu_custom_call.1']
    #allocation6 [shape = 'u8[24576]{0}', space=vmem, size = 0x6000, scoped, tag = 'input window, operand 1, single buffered']
    #allocation7 [shape = 'u8[8192]{0}', space=vmem, size = 0x2000, scoped, tag = 'output window, operand 0, single buffered']
    %7 = vsyncpa [#allocation5], 0
    %8 = vsyncpa [#allocation3], 0
    %9 = vsyncpa [#allocation4], 0
    // Predicated region
    $region2: #{tpu_custom_call.1} parent=1 // pred_check
      _
    $region3: #{tpu_custom_call.1} parent=1 // pred_check_branch
      %11 = sbr.rel (0) target = $region5
    $region4: #{tpu_custom_call.1} parent=1 // pred_region
      %s13 = ssub.s32 32, 32
      %14 = vsyncadd [#allocation5], %s13
      %17 = dma.hbm_to_smem %s0, 32, [#allocation2], [#allocation5]
    $region5: #{tpu_custom_call.1} parent=1 // pred_fallthru
      _
    // Predicated region
    $region6: #{tpu_custom_call.1} parent=1 // pred_check
      _
    $region7: #{tpu_custom_call.1} parent=1 // pred_check_branch
      %19 = sbr.rel (0) target = $region9
    $region8: #{tpu_custom_call.1} parent=1 // pred_region
      %s21 = ssub.s32 768, 768
      %22 = vsyncadd [#allocation3], %s21
      %s23 = sshll.u32 [#allocation6], 4
      %s24 = int_to_ptr.vmem [resolvable:$true] %s23
      %29 = dma.hbm_to_vmem [thread:$0]  %s1, 768, %s24, [#allocation3], 128, 128, 8
    $region9: #{tpu_custom_call.1} parent=1 // pred_fallthru
      _
    // Predicated region
    $region10: #{tpu_custom_call.1} parent=1 // pred_check
      _
    $region11: #{tpu_custom_call.1} parent=1 // pred_check_branch
      %31 = sbr.rel (0) target = $region13
    $region12: #{tpu_custom_call.1} parent=1 // pred_region
      %32 = dma.done [#allocation5], 32
    $region13: #{tpu_custom_call.1} parent=1 // pred_fallthru
      _
    // Predicated region
    $region14: #{tpu_custom_call.1} parent=1 // pred_check
      _
    $region15: #{tpu_custom_call.1} parent=1 // pred_check_branch
      %34 = sbr.rel (0) target = $region17
    $region16: #{tpu_custom_call.1} parent=1 // pred_region
      %35 = dma.done [#allocation3], 768
    $region17: #{tpu_custom_call.1} parent=1 // pred_fallthru
      _
    %36 = sfence
    %s37 = sld [smem:[#allocation2]]
    %s38 = sld [smem:[#allocation2 + $0x1]]
    %s39 = sld [smem:[#allocation2 + $0x2]]
    %s40 = sld [smem:[#allocation2 + $0x3]]
    %s41 = sld [smem:[#allocation2 + $0x4]]
    %s42 = sld [smem:[#allocation2 + $0x5]]
    %s43 = sld [smem:[#allocation2 + $0x6]]
    %s44 = sld [smem:[#allocation2 + $0x7]]
    %s45 = sld [smem:[#allocation2 + $0x8]]
    %s46 = sld [smem:[#allocation2 + $0x9]]
    %s47 = sld [smem:[#allocation2 + $0xa]]
    %s48 = sld [smem:[#allocation2 + $0xb]]
    %s49 = sld [smem:[#allocation2 + $0xc]]
    %s50 = sld [smem:[#allocation2 + $0xd]]
    %s51 = sld [smem:[#allocation2 + $0xe]]
    %s52 = sld [smem:[#allocation2 + $0xf]]
    %s53 = sld [smem:[#allocation2 + $0x10]]
    %s54 = sld [smem:[#allocation2 + $0x11]]
    %s55 = sld [smem:[#allocation2 + $0x12]]
    %s56 = sld [smem:[#allocation2 + $0x13]]
    %s57 = sld [smem:[#allocation2 + $0x14]]
    %s58 = sld [smem:[#allocation2 + $0x15]]
    %s59 = sld [smem:[#allocation2 + $0x16]]
    %s60 = sld [smem:[#allocation2 + $0x17]]
    %s61 = sld [smem:[#allocation2 + $0x18]]
    %s62 = sld [smem:[#allocation2 + $0x19]]
    %s63 = sld [smem:[#allocation2 + $0x1a]]
    %s64 = sld [smem:[#allocation2 + $0x1b]]
    %s65 = sld [smem:[#allocation2 + $0x1c]]
    %s66 = sld [smem:[#allocation2 + $0x1d]]
    %s67 = sld [smem:[#allocation2 + $0x1e]]
    %s68 = sld [smem:[#allocation2 + $0x1f]]
    %s69 = sld [smem:[#allocation2 + $0x20]]
    %s70 = sld [smem:[#allocation2 + $0x21]]
    %s71 = sld [smem:[#allocation2 + $0x22]]
    %s72 = sld [smem:[#allocation2 + $0x23]]
    %s73 = sld [smem:[#allocation2 + $0x24]]
    %s74 = sld [smem:[#allocation2 + $0x25]]
    %s75 = sld [smem:[#allocation2 + $0x26]]
    %s76 = sld [smem:[#allocation2 + $0x27]]
    %s77 = sld [smem:[#allocation2 + $0x28]]
    %s78 = sld [smem:[#allocation2 + $0x29]]
    %s79 = sld [smem:[#allocation2 + $0x2a]]
    %s80 = sld [smem:[#allocation2 + $0x2b]]
    %s81 = sld [smem:[#allocation2 + $0x2c]]
    %s82 = sld [smem:[#allocation2 + $0x2d]]
    %s83 = sld [smem:[#allocation2 + $0x2e]]
    %s84 = sld [smem:[#allocation2 + $0x2f]]
    %s85 = sld [smem:[#allocation2 + $0x30]]
    %s86 = sld [smem:[#allocation2 + $0x31]]
    %s87 = sld [smem:[#allocation2 + $0x32]]
    %s88 = sld [smem:[#allocation2 + $0x33]]
    %s89 = sld [smem:[#allocation2 + $0x34]]
    %s90 = sld [smem:[#allocation2 + $0x35]]
    %s91 = sld [smem:[#allocation2 + $0x36]]
    %s92 = sld [smem:[#allocation2 + $0x37]]
    %s93 = sld [smem:[#allocation2 + $0x38]]
    %s94 = sld [smem:[#allocation2 + $0x39]]
    %s95 = sld [smem:[#allocation2 + $0x3a]]
    %s96 = sld [smem:[#allocation2 + $0x3b]]
    %s97 = sld [smem:[#allocation2 + $0x3c]]
    %s98 = sld [smem:[#allocation2 + $0x3d]]
    %s99 = sld [smem:[#allocation2 + $0x3e]]
    %s100 = sld [smem:[#allocation2 + $0x3f]]
    %s101 = sld [smem:[#allocation2 + $0x40]]
    %s102 = sld [smem:[#allocation2 + $0x41]]
    %s103 = sld [smem:[#allocation2 + $0x42]]
    %s104 = sld [smem:[#allocation2 + $0x43]]
    %s105 = sld [smem:[#allocation2 + $0x44]]
    %s106 = sld [smem:[#allocation2 + $0x45]]
    %s107 = sld [smem:[#allocation2 + $0x46]]
    %s108 = sld [smem:[#allocation2 + $0x47]]
    %s109 = sld [smem:[#allocation2 + $0x48]]
    %s110 = sld [smem:[#allocation2 + $0x49]]
    %s111 = sld [smem:[#allocation2 + $0x4a]]
    %s112 = sld [smem:[#allocation2 + $0x4b]]
    %s113 = sld [smem:[#allocation2 + $0x4c]]
    %s114 = sld [smem:[#allocation2 + $0x4d]]
    %s115 = sld [smem:[#allocation2 + $0x4e]]
    %s116 = sld [smem:[#allocation2 + $0x4f]]
    %s117 = sld [smem:[#allocation2 + $0x50]]
    %s118 = sld [smem:[#allocation2 + $0x51]]
    %s119 = sld [smem:[#allocation2 + $0x52]]
    %s120 = sld [smem:[#allocation2 + $0x53]]
    %s121 = sld [smem:[#allocation2 + $0x54]]
    %s122 = sld [smem:[#allocation2 + $0x55]]
    %s123 = sld [smem:[#allocation2 + $0x56]]
    %s124 = sld [smem:[#allocation2 + $0x57]]
    %s125 = sld [smem:[#allocation2 + $0x58]]
    %s126 = sld [smem:[#allocation2 + $0x59]]
    %s127 = sld [smem:[#allocation2 + $0x5a]]
    %s128 = sld [smem:[#allocation2 + $0x5b]]
    %s129 = sld [smem:[#allocation2 + $0x5c]]
    %s130 = sld [smem:[#allocation2 + $0x5d]]
    %s131 = sld [smem:[#allocation2 + $0x5e]]
    %s132 = sld [smem:[#allocation2 + $0x5f]]
    %s133 = sld [smem:[#allocation2 + $0x60]]
    %s134 = sld [smem:[#allocation2 + $0x61]]
    %s135 = sld [smem:[#allocation2 + $0x62]]
    %s136 = sld [smem:[#allocation2 + $0x63]]
    %s137 = sld [smem:[#allocation2 + $0x64]]
    %s138 = sld [smem:[#allocation2 + $0x65]]
    %s139 = sld [smem:[#allocation2 + $0x66]]
    %s140 = sld [smem:[#allocation2 + $0x67]]
    %s141 = sld [smem:[#allocation2 + $0x68]]
    %s142 = sld [smem:[#allocation2 + $0x69]]
    %s143 = sld [smem:[#allocation2 + $0x6a]]
    %s144 = sld [smem:[#allocation2 + $0x6b]]
    %s145 = sld [smem:[#allocation2 + $0x6c]]
    %s146 = sld [smem:[#allocation2 + $0x6d]]
    %s147 = sld [smem:[#allocation2 + $0x6e]]
    %s148 = sld [smem:[#allocation2 + $0x6f]]
    %s149 = sld [smem:[#allocation2 + $0x70]]
    %s150 = sld [smem:[#allocation2 + $0x71]]
    %s151 = sld [smem:[#allocation2 + $0x72]]
    %s152 = sld [smem:[#allocation2 + $0x73]]
    %s153 = sld [smem:[#allocation2 + $0x74]]
    %s154 = sld [smem:[#allocation2 + $0x75]]
    %s155 = sld [smem:[#allocation2 + $0x76]]
    %s156 = sld [smem:[#allocation2 + $0x77]]
    %s157 = sld [smem:[#allocation2 + $0x78]]
    %s158 = sld [smem:[#allocation2 + $0x79]]
    %s159 = sld [smem:[#allocation2 + $0x7a]]
    %s160 = sld [smem:[#allocation2 + $0x7b]]
    %s161 = sld [smem:[#allocation2 + $0x7c]]
    %s162 = sld [smem:[#allocation2 + $0x7d]]
    %s163 = sld [smem:[#allocation2 + $0x7e]]
    %s164 = sld [smem:[#allocation2 + $0x7f]]
    %s165 = sld [smem:[#allocation2 + $0x80]]
    %s166 = sld [smem:[#allocation2 + $0x81]]
    %s167 = sld [smem:[#allocation2 + $0x82]]
    %s168 = sld [smem:[#allocation2 + $0x83]]
    %s169 = sld [smem:[#allocation2 + $0x84]]
    %s170 = sld [smem:[#allocation2 + $0x85]]
    %s171 = sld [smem:[#allocation2 + $0x86]]
    %s172 = sld [smem:[#allocation2 + $0x87]]
    %s173 = sld [smem:[#allocation2 + $0x88]]
    %s174 = sld [smem:[#allocation2 + $0x89]]
    %s175 = sld [smem:[#allocation2 + $0x8a]]
    %s176 = sld [smem:[#allocation2 + $0x8b]]
    %s177 = sld [smem:[#allocation2 + $0x8c]]
    %s178 = sld [smem:[#allocation2 + $0x8d]]
    %s179 = sld [smem:[#allocation2 + $0x8e]]
    %s180 = sld [smem:[#allocation2 + $0x8f]]
    %s181 = sld [smem:[#allocation2 + $0x90]]
    %s182 = sld [smem:[#allocation2 + $0x91]]
    %s183 = sld [smem:[#allocation2 + $0x92]]
    %s184 = sld [smem:[#allocation2 + $0x93]]
    %s185 = sld [smem:[#allocation2 + $0x94]]
    %s186 = sld [smem:[#allocation2 + $0x95]]
    %s187 = sld [smem:[#allocation2 + $0x96]]
    %s188 = sld [smem:[#allocation2 + $0x97]]
    %s189 = sld [smem:[#allocation2 + $0x98]]
    %s190 = sld [smem:[#allocation2 + $0x99]]
    %s191 = sld [smem:[#allocation2 + $0x9a]]
    %s192 = sld [smem:[#allocation2 + $0x9b]]
    %s193 = sld [smem:[#allocation2 + $0x9c]]
    %s194 = sld [smem:[#allocation2 + $0x9d]]
    %s195 = sld [smem:[#allocation2 + $0x9e]]
    %s196 = sld [smem:[#allocation2 + $0x9f]]
    %s197 = sld [smem:[#allocation2 + $0xa0]]
    %s198 = sld [smem:[#allocation2 + $0xa1]]
    %s199 = sld [smem:[#allocation2 + $0xa2]]
    %s200 = sld [smem:[#allocation2 + $0xa3]]
    %s201 = sld [smem:[#allocation2 + $0xa4]]
    %s202 = sld [smem:[#allocation2 + $0xa5]]
    %s203 = sld [smem:[#allocation2 + $0xa6]]
    %s204 = sld [smem:[#allocation2 + $0xa7]]
    %s205 = sld [smem:[#allocation2 + $0xa8]]
    %s206 = sld [smem:[#allocation2 + $0xa9]]
    %s207 = sld [smem:[#allocation2 + $0xaa]]
    %s208 = sld [smem:[#allocation2 + $0xab]]
    %s209 = sld [smem:[#allocation2 + $0xac]]
    %s210 = sld [smem:[#allocation2 + $0xad]]
    %s211 = sld [smem:[#allocation2 + $0xae]]
    %s212 = sld [smem:[#allocation2 + $0xaf]]
    %s213 = sld [smem:[#allocation2 + $0xb0]]
    %s214 = sld [smem:[#allocation2 + $0xb1]]
    %s215 = sld [smem:[#allocation2 + $0xb2]]
    %s216 = sld [smem:[#allocation2 + $0xb3]]
    %s217 = sld [smem:[#allocation2 + $0xb4]]
    %s218 = sld [smem:[#allocation2 + $0xb5]]
    %s219 = sld [smem:[#allocation2 + $0xb6]]
    %s220 = sld [smem:[#allocation2 + $0xb7]]
    %s221 = sld [smem:[#allocation2 + $0xb8]]
    %s222 = sld [smem:[#allocation2 + $0xb9]]
    %s223 = sld [smem:[#allocation2 + $0xba]]
    %s224 = sld [smem:[#allocation2 + $0xbb]]
    %s225 = sld [smem:[#allocation2 + $0xbc]]
    %s226 = sld [smem:[#allocation2 + $0xbd]]
    %s227 = sld [smem:[#allocation2 + $0xbe]]
    %s228 = sld [smem:[#allocation2 + $0xbf]]
    %s229 = sld [smem:[#allocation2 + $0xc0]]
    %s230 = sld [smem:[#allocation2 + $0xc1]]
    %s231 = sld [smem:[#allocation2 + $0xc2]]
    %s232 = sld [smem:[#allocation2 + $0xc3]]
    %s233 = sld [smem:[#allocation2 + $0xc4]]
    %s234 = sld [smem:[#allocation2 + $0xc5]]
    %s235 = sld [smem:[#allocation2 + $0xc6]]
    %s236 = sld [smem:[#allocation2 + $0xc7]]
    %s237 = sld [smem:[#allocation2 + $0xc8]]
    %s238 = sld [smem:[#allocation2 + $0xc9]]
    %s239 = sld [smem:[#allocation2 + $0xca]]
    %s240 = sld [smem:[#allocation2 + $0xcb]]
    %s241 = sld [smem:[#allocation2 + $0xcc]]
    %s242 = sld [smem:[#allocation2 + $0xcd]]
    %s243 = sld [smem:[#allocation2 + $0xce]]
    %s244 = sld [smem:[#allocation2 + $0xcf]]
    %s245 = sld [smem:[#allocation2 + $0xd0]]
    %v246 = vld [vmem:[#allocation6] sm:$0xff]
    %v247 = vld [vmem:[#allocation6 + $0x8] sm:$0xff]
    %s248 = sadd.s32 0, 16
    %s249 = scalar_lea.vmem [#allocation6], %s248
    %v250 = vld [vmem:[%s249] sm:$0xff]
    %v251 = vld [vmem:[%s249 + $0x8] sm:$0xff]
    %s252 = sadd.s32 0, 32
    %s253 = scalar_lea.vmem [#allocation6], %s252
    %v254 = vld [vmem:[%s253] sm:$0xff]
    %v255 = vld [vmem:[%s253 + $0x8] sm:$0xff]
    %v256 = vstv %s37
    %v257 = vmul.f32 %v246, %v256
    %v258 = vmul.f32 %v247, %v256
    %v259 = vstv %s38
    %v260 = vmul.f32 %v250, %v259
    %v261 = vmul.f32 %v251, %v259
    %v262 = vadd.f32 %v257, %v260
    %v263 = vadd.f32 %v258, %v261
    %v264 = vstv %s39
    %v265 = vmul.f32 %v254, %v264
    %v266 = vmul.f32 %v255, %v264
    %v267 = vadd.f32 %v262, %v265
    %v268 = vadd.f32 %v263, %v266
    %v269 = vstv %s85
    %v270 = vadd.f32 %v267, %v269
    %v271 = vadd.f32 %v268, %v269
    %v272 = vmax.f32 %v270, 0.0
    %v273 = vmax.f32 %v271, 0.0
    %v274 = vstv %s101
    %v275 = vmul.f32 %v272, %v274
    %v276 = vmul.f32 %v273, %v274
    %v277 = vstv %s117
    %v278 = vmul.f32 %v272, %v277
    %v279 = vmul.f32 %v273, %v277
    %v280 = vstv %s133
    %v281 = vmul.f32 %v272, %v280
    %v282 = vmul.f32 %v273, %v280
    %v283 = vstv %s149
    %v284 = vmul.f32 %v272, %v283
    %v285 = vmul.f32 %v273, %v283
    %v286 = vstv %s165
    %v287 = vmul.f32 %v272, %v286
    %v288 = vmul.f32 %v273, %v286
    %v289 = vstv %s181
    %v290 = vmul.f32 %v272, %v289
    %v291 = vmul.f32 %v273, %v289
    %v292 = vstv %s197
    %v293 = vmul.f32 %v272, %v292
    %v294 = vmul.f32 %v273, %v292
    %v295 = vstv %s213
    %v296 = vmul.f32 %v272, %v295
    %v297 = vmul.f32 %v273, %v295
    %v298 = vstv %s40
    %v299 = vmul.f32 %v246, %v298
    %v300 = vmul.f32 %v247, %v298
    %v301 = vstv %s41
    %v302 = vmul.f32 %v250, %v301
    %v303 = vmul.f32 %v251, %v301
    %v304 = vadd.f32 %v299, %v302
    %v305 = vadd.f32 %v300, %v303
    %v306 = vstv %s42
    %v307 = vmul.f32 %v254, %v306
    %v308 = vmul.f32 %v255, %v306
    %v309 = vadd.f32 %v304, %v307
    %v310 = vadd.f32 %v305, %v308
    %v311 = vstv %s86
    %v312 = vadd.f32 %v309, %v311
    %v313 = vadd.f32 %v310, %v311
    %v314 = vmax.f32 %v312, 0.0
    %v315 = vmax.f32 %v313, 0.0
    %v316 = vstv %s102
    %v317 = vmul.f32 %v314, %v316
    %v318 = vmul.f32 %v315, %v316
    %v319 = vadd.f32 %v275, %v317
    %v320 = vadd.f32 %v276, %v318
    %v321 = vstv %s118
    %v322 = vmul.f32 %v314, %v321
    %v323 = vmul.f32 %v315, %v321
    %v324 = vadd.f32 %v278, %v322
    %v325 = vadd.f32 %v279, %v323
    %v326 = vstv %s134
    %v327 = vmul.f32 %v314, %v326
    %v328 = vmul.f32 %v315, %v326
    %v329 = vadd.f32 %v281, %v327
    %v330 = vadd.f32 %v282, %v328
    %v331 = vstv %s150
    %v332 = vmul.f32 %v314, %v331
    %v333 = vmul.f32 %v315, %v331
    %v334 = vadd.f32 %v284, %v332
    %v335 = vadd.f32 %v285, %v333
    %v336 = vstv %s166
    %v337 = vmul.f32 %v314, %v336
    %v338 = vmul.f32 %v315, %v336
    %v339 = vadd.f32 %v287, %v337
    %v340 = vadd.f32 %v288, %v338
    %v341 = vstv %s182
    %v342 = vmul.f32 %v314, %v341
    %v343 = vmul.f32 %v315, %v341
    %v344 = vadd.f32 %v290, %v342
    %v345 = vadd.f32 %v291, %v343
    %v346 = vstv %s198
    %v347 = vmul.f32 %v314, %v346
    %v348 = vmul.f32 %v315, %v346
    %v349 = vadd.f32 %v293, %v347
    %v350 = vadd.f32 %v294, %v348
    %v351 = vstv %s214
    %v352 = vmul.f32 %v314, %v351
    %v353 = vmul.f32 %v315, %v351
    %v354 = vadd.f32 %v296, %v352
    %v355 = vadd.f32 %v297, %v353
    %v356 = vstv %s43
    %v357 = vmul.f32 %v246, %v356
    %v358 = vmul.f32 %v247, %v356
    %v359 = vstv %s44
    %v360 = vmul.f32 %v250, %v359
    %v361 = vmul.f32 %v251, %v359
    %v362 = vadd.f32 %v357, %v360
    %v363 = vadd.f32 %v358, %v361
    %v364 = vstv %s45
    %v365 = vmul.f32 %v254, %v364
    %v366 = vmul.f32 %v255, %v364
    %v367 = vadd.f32 %v362, %v365
    %v368 = vadd.f32 %v363, %v366
    %v369 = vstv %s87
    %v370 = vadd.f32 %v367, %v369
    %v371 = vadd.f32 %v368, %v369
    %v372 = vmax.f32 %v370, 0.0
    %v373 = vmax.f32 %v371, 0.0
    %v374 = vstv %s103
    %v375 = vmul.f32 %v372, %v374
    %v376 = vmul.f32 %v373, %v374
    %v377 = vadd.f32 %v319, %v375
    %v378 = vadd.f32 %v320, %v376
    %v379 = vstv %s119
    %v380 = vmul.f32 %v372, %v379
    %v381 = vmul.f32 %v373, %v379
    %v382 = vadd.f32 %v324, %v380
    %v383 = vadd.f32 %v325, %v381
    %v384 = vstv %s135
    %v385 = vmul.f32 %v372, %v384
    %v386 = vmul.f32 %v373, %v384
    %v387 = vadd.f32 %v329, %v385
    %v388 = vadd.f32 %v330, %v386
    %v389 = vstv %s151
    %v390 = vmul.f32 %v372, %v389
    %v391 = vmul.f32 %v373, %v389
    %v392 = vadd.f32 %v334, %v390
    %v393 = vadd.f32 %v335, %v391
    %v394 = vstv %s167
    %v395 = vmul.f32 %v372, %v394
    %v396 = vmul.f32 %v373, %v394
    %v397 = vadd.f32 %v339, %v395
    %v398 = vadd.f32 %v340, %v396
    %v399 = vstv %s183
    %v400 = vmul.f32 %v372, %v399
    %v401 = vmul.f32 %v373, %v399
    %v402 = vadd.f32 %v344, %v400
    %v403 = vadd.f32 %v345, %v401
    %v404 = vstv %s199
    %v405 = vmul.f32 %v372, %v404
    %v406 = vmul.f32 %v373, %v404
    %v407 = vadd.f32 %v349, %v405
    %v408 = vadd.f32 %v350, %v406
    %v409 = vstv %s215
    %v410 = vmul.f32 %v372, %v409
    %v411 = vmul.f32 %v373, %v409
    %v412 = vadd.f32 %v354, %v410
    %v413 = vadd.f32 %v355, %v411
    %v414 = vstv %s46
    %v415 = vmul.f32 %v246, %v414
    %v416 = vmul.f32 %v247, %v414
    %v417 = vstv %s47
    %v418 = vmul.f32 %v250, %v417
    %v419 = vmul.f32 %v251, %v417
    %v420 = vadd.f32 %v415, %v418
    %v421 = vadd.f32 %v416, %v419
    %v422 = vstv %s48
    %v423 = vmul.f32 %v254, %v422
    %v424 = vmul.f32 %v255, %v422
    %v425 = vadd.f32 %v420, %v423
    %v426 = vadd.f32 %v421, %v424
    %v427 = vstv %s88
    %v428 = vadd.f32 %v425, %v427
    %v429 = vadd.f32 %v426, %v427
    %v430 = vmax.f32 %v428, 0.0
    %v431 = vmax.f32 %v429, 0.0
    %v432 = vstv %s104
    %v433 = vmul.f32 %v430, %v432
    %v434 = vmul.f32 %v431, %v432
    %v435 = vadd.f32 %v377, %v433
    %v436 = vadd.f32 %v378, %v434
    %v437 = vstv %s120
    %v438 = vmul.f32 %v430, %v437
    %v439 = vmul.f32 %v431, %v437
    %v440 = vadd.f32 %v382, %v438
    %v441 = vadd.f32 %v383, %v439
    %v442 = vstv %s136
    %v443 = vmul.f32 %v430, %v442
    %v444 = vmul.f32 %v431, %v442
    %v445 = vadd.f32 %v387, %v443
    %v446 = vadd.f32 %v388, %v444
    %v447 = vstv %s152
    %v448 = vmul.f32 %v430, %v447
    %v449 = vmul.f32 %v431, %v447
    %v450 = vadd.f32 %v392, %v448
    %v451 = vadd.f32 %v393, %v449
    %v452 = vstv %s168
    %v453 = vmul.f32 %v430, %v452
    %v454 = vmul.f32 %v431, %v452
    %v455 = vadd.f32 %v397, %v453
    %v456 = vadd.f32 %v398, %v454
    %v457 = vstv %s184
    %v458 = vmul.f32 %v430, %v457
    %v459 = vmul.f32 %v431, %v457
    %v460 = vadd.f32 %v402, %v458
    %v461 = vadd.f32 %v403, %v459
    %v462 = vstv %s200
    %v463 = vmul.f32 %v430, %v462
    %v464 = vmul.f32 %v431, %v462
    %v465 = vadd.f32 %v407, %v463
    %v466 = vadd.f32 %v408, %v464
    %v467 = vstv %s216
    %v468 = vmul.f32 %v430, %v467
    %v469 = vmul.f32 %v431, %v467
    %v470 = vadd.f32 %v412, %v468
    %v471 = vadd.f32 %v413, %v469
    %v472 = vstv %s49
    %v473 = vmul.f32 %v246, %v472
    %v474 = vmul.f32 %v247, %v472
    %v475 = vstv %s50
    %v476 = vmul.f32 %v250, %v475
    %v477 = vmul.f32 %v251, %v475
    %v478 = vadd.f32 %v473, %v476
    %v479 = vadd.f32 %v474, %v477
    %v480 = vstv %s51
    %v481 = vmul.f32 %v254, %v480
    %v482 = vmul.f32 %v255, %v480
    %v483 = vadd.f32 %v478, %v481
    %v484 = vadd.f32 %v479, %v482
    %v485 = vstv %s89
    %v486 = vadd.f32 %v483, %v485
    %v487 = vadd.f32 %v484, %v485
    %v488 = vmax.f32 %v486, 0.0
    %v489 = vmax.f32 %v487, 0.0
    %v490 = vstv %s105
    %v491 = vmul.f32 %v488, %v490
    %v492 = vmul.f32 %v489, %v490
    %v493 = vadd.f32 %v435, %v491
    %v494 = vadd.f32 %v436, %v492
    %v495 = vstv %s121
    %v496 = vmul.f32 %v488, %v495
    %v497 = vmul.f32 %v489, %v495
    %v498 = vadd.f32 %v440, %v496
    %v499 = vadd.f32 %v441, %v497
    %v500 = vstv %s137
    %v501 = vmul.f32 %v488, %v500
    %v502 = vmul.f32 %v489, %v500
    %v503 = vadd.f32 %v445, %v501
    %v504 = vadd.f32 %v446, %v502
    %v505 = vstv %s153
    %v506 = vmul.f32 %v488, %v505
    %v507 = vmul.f32 %v489, %v505
    %v508 = vadd.f32 %v450, %v506
    %v509 = vadd.f32 %v451, %v507
    %v510 = vstv %s169
    %v511 = vmul.f32 %v488, %v510
    %v512 = vmul.f32 %v489, %v510
    %v513 = vadd.f32 %v455, %v511
    %v514 = vadd.f32 %v456, %v512
    %v515 = vstv %s185
    %v516 = vmul.f32 %v488, %v515
    %v517 = vmul.f32 %v489, %v515
    %v518 = vadd.f32 %v460, %v516
    %v519 = vadd.f32 %v461, %v517
    %v520 = vstv %s201
    %v521 = vmul.f32 %v488, %v520
    %v522 = vmul.f32 %v489, %v520
    %v523 = vadd.f32 %v465, %v521
    %v524 = vadd.f32 %v466, %v522
    %v525 = vstv %s217
    %v526 = vmul.f32 %v488, %v525
    %v527 = vmul.f32 %v489, %v525
    %v528 = vadd.f32 %v470, %v526
    %v529 = vadd.f32 %v471, %v527
    %v530 = vstv %s52
    %v531 = vmul.f32 %v246, %v530
    %v532 = vmul.f32 %v247, %v530
    %v533 = vstv %s53
    %v534 = vmul.f32 %v250, %v533
    %v535 = vmul.f32 %v251, %v533
    %v536 = vadd.f32 %v531, %v534
    %v537 = vadd.f32 %v532, %v535
    %v538 = vstv %s54
    %v539 = vmul.f32 %v254, %v538
    %v540 = vmul.f32 %v255, %v538
    %v541 = vadd.f32 %v536, %v539
    %v542 = vadd.f32 %v537, %v540
    %v543 = vstv %s90
    %v544 = vadd.f32 %v541, %v543
    %v545 = vadd.f32 %v542, %v543
    %v546 = vmax.f32 %v544, 0.0
    %v547 = vmax.f32 %v545, 0.0
    %v548 = vstv %s106
    %v549 = vmul.f32 %v546, %v548
    %v550 = vmul.f32 %v547, %v548
    %v551 = vadd.f32 %v493, %v549
    %v552 = vadd.f32 %v494, %v550
    %v553 = vstv %s122
    %v554 = vmul.f32 %v546, %v553
    %v555 = vmul.f32 %v547, %v553
    %v556 = vadd.f32 %v498, %v554
    %v557 = vadd.f32 %v499, %v555
    %v558 = vstv %s138
    %v559 = vmul.f32 %v546, %v558
    %v560 = vmul.f32 %v547, %v558
    %v561 = vadd.f32 %v503, %v559
    %v562 = vadd.f32 %v504, %v560
    %v563 = vstv %s154
    %v564 = vmul.f32 %v546, %v563
    %v565 = vmul.f32 %v547, %v563
    %v566 = vadd.f32 %v508, %v564
    %v567 = vadd.f32 %v509, %v565
    %v568 = vstv %s170
    %v569 = vmul.f32 %v546, %v568
    %v570 = vmul.f32 %v547, %v568
    %v571 = vadd.f32 %v513, %v569
    %v572 = vadd.f32 %v514, %v570
    %v573 = vstv %s186
    %v574 = vmul.f32 %v546, %v573
    %v575 = vmul.f32 %v547, %v573
    %v576 = vadd.f32 %v518, %v574
    %v577 = vadd.f32 %v519, %v575
    %v578 = vstv %s202
    %v579 = vmul.f32 %v546, %v578
    %v580 = vmul.f32 %v547, %v578
    %v581 = vadd.f32 %v523, %v579
    %v582 = vadd.f32 %v524, %v580
    %v583 = vstv %s218
    %v584 = vmul.f32 %v546, %v583
    %v585 = vmul.f32 %v547, %v583
    %v586 = vadd.f32 %v528, %v584
    %v587 = vadd.f32 %v529, %v585
    %v588 = vstv %s55
    %v589 = vmul.f32 %v246, %v588
    %v590 = vmul.f32 %v247, %v588
    %v591 = vstv %s56
    %v592 = vmul.f32 %v250, %v591
    %v593 = vmul.f32 %v251, %v591
    %v594 = vadd.f32 %v589, %v592
    %v595 = vadd.f32 %v590, %v593
    %v596 = vstv %s57
    %v597 = vmul.f32 %v254, %v596
    %v598 = vmul.f32 %v255, %v596
    %v599 = vadd.f32 %v594, %v597
    %v600 = vadd.f32 %v595, %v598
    %v601 = vstv %s91
    %v602 = vadd.f32 %v599, %v601
    %v603 = vadd.f32 %v600, %v601
    %v604 = vmax.f32 %v602, 0.0
    %v605 = vmax.f32 %v603, 0.0
    %v606 = vstv %s107
    %v607 = vmul.f32 %v604, %v606
    %v608 = vmul.f32 %v605, %v606
    %v609 = vadd.f32 %v551, %v607
    %v610 = vadd.f32 %v552, %v608
    %v611 = vstv %s123
    %v612 = vmul.f32 %v604, %v611
    %v613 = vmul.f32 %v605, %v611
    %v614 = vadd.f32 %v556, %v612
    %v615 = vadd.f32 %v557, %v613
    %v616 = vstv %s139
    %v617 = vmul.f32 %v604, %v616
    %v618 = vmul.f32 %v605, %v616
    %v619 = vadd.f32 %v561, %v617
    %v620 = vadd.f32 %v562, %v618
    %v621 = vstv %s155
    %v622 = vmul.f32 %v604, %v621
    %v623 = vmul.f32 %v605, %v621
    %v624 = vadd.f32 %v566, %v622
    %v625 = vadd.f32 %v567, %v623
    %v626 = vstv %s171
    %v627 = vmul.f32 %v604, %v626
    %v628 = vmul.f32 %v605, %v626
    %v629 = vadd.f32 %v571, %v627
    %v630 = vadd.f32 %v572, %v628
    %v631 = vstv %s187
    %v632 = vmul.f32 %v604, %v631
    %v633 = vmul.f32 %v605, %v631
    %v634 = vadd.f32 %v576, %v632
    %v635 = vadd.f32 %v577, %v633
    %v636 = vstv %s203
    %v637 = vmul.f32 %v604, %v636
    %v638 = vmul.f32 %v605, %v636
    %v639 = vadd.f32 %v581, %v637
    %v640 = vadd.f32 %v582, %v638
    %v641 = vstv %s219
    %v642 = vmul.f32 %v604, %v641
    %v643 = vmul.f32 %v605, %v641
    %v644 = vadd.f32 %v586, %v642
    %v645 = vadd.f32 %v587, %v643
    %v646 = vstv %s58
    %v647 = vmul.f32 %v246, %v646
    %v648 = vmul.f32 %v247, %v646
    %v649 = vstv %s59
    %v650 = vmul.f32 %v250, %v649
    %v651 = vmul.f32 %v251, %v649
    %v652 = vadd.f32 %v647, %v650
    %v653 = vadd.f32 %v648, %v651
    %v654 = vstv %s60
    %v655 = vmul.f32 %v254, %v654
    %v656 = vmul.f32 %v255, %v654
    %v657 = vadd.f32 %v652, %v655
    %v658 = vadd.f32 %v653, %v656
    %v659 = vstv %s92
    %v660 = vadd.f32 %v657, %v659
    %v661 = vadd.f32 %v658, %v659
    %v662 = vmax.f32 %v660, 0.0
    %v663 = vmax.f32 %v661, 0.0
    %v664 = vstv %s108
    %v665 = vmul.f32 %v662, %v664
    %v666 = vmul.f32 %v663, %v664
    %v667 = vadd.f32 %v609, %v665
    %v668 = vadd.f32 %v610, %v666
    %v669 = vstv %s124
    %v670 = vmul.f32 %v662, %v669
    %v671 = vmul.f32 %v663, %v669
    %v672 = vadd.f32 %v614, %v670
    %v673 = vadd.f32 %v615, %v671
    %v674 = vstv %s140
    %v675 = vmul.f32 %v662, %v674
    %v676 = vmul.f32 %v663, %v674
    %v677 = vadd.f32 %v619, %v675
    %v678 = vadd.f32 %v620, %v676
    %v679 = vstv %s156
    %v680 = vmul.f32 %v662, %v679
    %v681 = vmul.f32 %v663, %v679
    %v682 = vadd.f32 %v624, %v680
    %v683 = vadd.f32 %v625, %v681
    %v684 = vstv %s172
    %v685 = vmul.f32 %v662, %v684
    %v686 = vmul.f32 %v663, %v684
    %v687 = vadd.f32 %v629, %v685
    %v688 = vadd.f32 %v630, %v686
    %v689 = vstv %s188
    %v690 = vmul.f32 %v662, %v689
    %v691 = vmul.f32 %v663, %v689
    %v692 = vadd.f32 %v634, %v690
    %v693 = vadd.f32 %v635, %v691
    %v694 = vstv %s204
    %v695 = vmul.f32 %v662, %v694
    %v696 = vmul.f32 %v663, %v694
    %v697 = vadd.f32 %v639, %v695
    %v698 = vadd.f32 %v640, %v696
    %v699 = vstv %s220
    %v700 = vmul.f32 %v662, %v699
    %v701 = vmul.f32 %v663, %v699
    %v702 = vadd.f32 %v644, %v700
    %v703 = vadd.f32 %v645, %v701
    %v704 = vstv %s61
    %v705 = vmul.f32 %v246, %v704
    %v706 = vmul.f32 %v247, %v704
    %v707 = vstv %s62
    %v708 = vmul.f32 %v250, %v707
    %v709 = vmul.f32 %v251, %v707
    %v710 = vadd.f32 %v705, %v708
    %v711 = vadd.f32 %v706, %v709
    %v712 = vstv %s63
    %v713 = vmul.f32 %v254, %v712
    %v714 = vmul.f32 %v255, %v712
    %v715 = vadd.f32 %v710, %v713
    %v716 = vadd.f32 %v711, %v714
    %v717 = vstv %s93
    %v718 = vadd.f32 %v715, %v717
    %v719 = vadd.f32 %v716, %v717
    %v720 = vmax.f32 %v718, 0.0
    %v721 = vmax.f32 %v719, 0.0
    %v722 = vstv %s109
    %v723 = vmul.f32 %v720, %v722
    %v724 = vmul.f32 %v721, %v722
    %v725 = vadd.f32 %v667, %v723
    %v726 = vadd.f32 %v668, %v724
    %v727 = vstv %s125
    %v728 = vmul.f32 %v720, %v727
    %v729 = vmul.f32 %v721, %v727
    %v730 = vadd.f32 %v672, %v728
    %v731 = vadd.f32 %v673, %v729
    %v732 = vstv %s141
    %v733 = vmul.f32 %v720, %v732
    %v734 = vmul.f32 %v721, %v732
    %v735 = vadd.f32 %v677, %v733
    %v736 = vadd.f32 %v678, %v734
    %v737 = vstv %s157
    %v738 = vmul.f32 %v720, %v737
    %v739 = vmul.f32 %v721, %v737
    %v740 = vadd.f32 %v682, %v738
    %v741 = vadd.f32 %v683, %v739
    %v742 = vstv %s173
    %v743 = vmul.f32 %v720, %v742
    %v744 = vmul.f32 %v721, %v742
    %v745 = vadd.f32 %v687, %v743
    %v746 = vadd.f32 %v688, %v744
    %v747 = vstv %s189
    %v748 = vmul.f32 %v720, %v747
    %v749 = vmul.f32 %v721, %v747
    %v750 = vadd.f32 %v692, %v748
    %v751 = vadd.f32 %v693, %v749
    %v752 = vstv %s205
    %v753 = vmul.f32 %v720, %v752
    %v754 = vmul.f32 %v721, %v752
    %v755 = vadd.f32 %v697, %v753
    %v756 = vadd.f32 %v698, %v754
    %v757 = vstv %s221
    %v758 = vmul.f32 %v720, %v757
    %v759 = vmul.f32 %v721, %v757
    %v760 = vadd.f32 %v702, %v758
    %v761 = vadd.f32 %v703, %v759
    %v762 = vstv %s64
    %v763 = vmul.f32 %v246, %v762
    %v764 = vmul.f32 %v247, %v762
    %v765 = vstv %s65
    %v766 = vmul.f32 %v250, %v765
    %v767 = vmul.f32 %v251, %v765
    %v768 = vadd.f32 %v763, %v766
    %v769 = vadd.f32 %v764, %v767
    %v770 = vstv %s66
    %v771 = vmul.f32 %v254, %v770
    %v772 = vmul.f32 %v255, %v770
    %v773 = vadd.f32 %v768, %v771
    %v774 = vadd.f32 %v769, %v772
    %v775 = vstv %s94
    %v776 = vadd.f32 %v773, %v775
    %v777 = vadd.f32 %v774, %v775
    %v778 = vmax.f32 %v776, 0.0
    %v779 = vmax.f32 %v777, 0.0
    %v780 = vstv %s110
    %v781 = vmul.f32 %v778, %v780
    %v782 = vmul.f32 %v779, %v780
    %v783 = vadd.f32 %v725, %v781
    %v784 = vadd.f32 %v726, %v782
    %v785 = vstv %s126
    %v786 = vmul.f32 %v778, %v785
    %v787 = vmul.f32 %v779, %v785
    %v788 = vadd.f32 %v730, %v786
    %v789 = vadd.f32 %v731, %v787
    %v790 = vstv %s142
    %v791 = vmul.f32 %v778, %v790
    %v792 = vmul.f32 %v779, %v790
    %v793 = vadd.f32 %v735, %v791
    %v794 = vadd.f32 %v736, %v792
    %v795 = vstv %s158
    %v796 = vmul.f32 %v778, %v795
    %v797 = vmul.f32 %v779, %v795
    %v798 = vadd.f32 %v740, %v796
    %v799 = vadd.f32 %v741, %v797
    %v800 = vstv %s174
    %v801 = vmul.f32 %v778, %v800
    %v802 = vmul.f32 %v779, %v800
    %v803 = vadd.f32 %v745, %v801
    %v804 = vadd.f32 %v746, %v802
    %v805 = vstv %s190
    %v806 = vmul.f32 %v778, %v805
    %v807 = vmul.f32 %v779, %v805
    %v808 = vadd.f32 %v750, %v806
    %v809 = vadd.f32 %v751, %v807
    %v810 = vstv %s206
    %v811 = vmul.f32 %v778, %v810
    %v812 = vmul.f32 %v779, %v810
    %v813 = vadd.f32 %v755, %v811
    %v814 = vadd.f32 %v756, %v812
    %v815 = vstv %s222
    %v816 = vmul.f32 %v778, %v815
    %v817 = vmul.f32 %v779, %v815
    %v818 = vadd.f32 %v760, %v816
    %v819 = vadd.f32 %v761, %v817
    %v820 = vstv %s67
    %v821 = vmul.f32 %v246, %v820
    %v822 = vmul.f32 %v247, %v820
    %v823 = vstv %s68
    %v824 = vmul.f32 %v250, %v823
    %v825 = vmul.f32 %v251, %v823
    %v826 = vadd.f32 %v821, %v824
    %v827 = vadd.f32 %v822, %v825
    %v828 = vstv %s69
    %v829 = vmul.f32 %v254, %v828
    %v830 = vmul.f32 %v255, %v828
    %v831 = vadd.f32 %v826, %v829
    %v832 = vadd.f32 %v827, %v830
    %v833 = vstv %s95
    %v834 = vadd.f32 %v831, %v833
    %v835 = vadd.f32 %v832, %v833
    %v836 = vmax.f32 %v834, 0.0
    %v837 = vmax.f32 %v835, 0.0
    %v838 = vstv %s111
    %v839 = vmul.f32 %v836, %v838
    %v840 = vmul.f32 %v837, %v838
    %v841 = vadd.f32 %v783, %v839
    %v842 = vadd.f32 %v784, %v840
    %v843 = vstv %s127
    %v844 = vmul.f32 %v836, %v843
    %v845 = vmul.f32 %v837, %v843
    %v846 = vadd.f32 %v788, %v844
    %v847 = vadd.f32 %v789, %v845
    %v848 = vstv %s143
    %v849 = vmul.f32 %v836, %v848
    %v850 = vmul.f32 %v837, %v848
    %v851 = vadd.f32 %v793, %v849
    %v852 = vadd.f32 %v794, %v850
    %v853 = vstv %s159
    %v854 = vmul.f32 %v836, %v853
    %v855 = vmul.f32 %v837, %v853
    %v856 = vadd.f32 %v798, %v854
    %v857 = vadd.f32 %v799, %v855
    %v858 = vstv %s175
    %v859 = vmul.f32 %v836, %v858
    %v860 = vmul.f32 %v837, %v858
    %v861 = vadd.f32 %v803, %v859
    %v862 = vadd.f32 %v804, %v860
    %v863 = vstv %s191
    %v864 = vmul.f32 %v836, %v863
    %v865 = vmul.f32 %v837, %v863
    %v866 = vadd.f32 %v808, %v864
    %v867 = vadd.f32 %v809, %v865
    %v868 = vstv %s207
    %v869 = vmul.f32 %v836, %v868
    %v870 = vmul.f32 %v837, %v868
    %v871 = vadd.f32 %v813, %v869
    %v872 = vadd.f32 %v814, %v870
    %v873 = vstv %s223
    %v874 = vmul.f32 %v836, %v873
    %v875 = vmul.f32 %v837, %v873
    %v876 = vadd.f32 %v818, %v874
    %v877 = vadd.f32 %v819, %v875
    %v878 = vstv %s70
    %v879 = vmul.f32 %v246, %v878
    %v880 = vmul.f32 %v247, %v878
    %v881 = vstv %s71
    %v882 = vmul.f32 %v250, %v881
    %v883 = vmul.f32 %v251, %v881
    %v884 = vadd.f32 %v879, %v882
    %v885 = vadd.f32 %v880, %v883
    %v886 = vstv %s72
    %v887 = vmul.f32 %v254, %v886
    %v888 = vmul.f32 %v255, %v886
    %v889 = vadd.f32 %v884, %v887
    %v890 = vadd.f32 %v885, %v888
    %v891 = vstv %s96
    %v892 = vadd.f32 %v889, %v891
    %v893 = vadd.f32 %v890, %v891
    %v894 = vmax.f32 %v892, 0.0
    %v895 = vmax.f32 %v893, 0.0
    %v896 = vstv %s112
    %v897 = vmul.f32 %v894, %v896
    %v898 = vmul.f32 %v895, %v896
    %v899 = vadd.f32 %v841, %v897
    %v900 = vadd.f32 %v842, %v898
    %v901 = vstv %s128
    %v902 = vmul.f32 %v894, %v901
    %v903 = vmul.f32 %v895, %v901
    %v904 = vadd.f32 %v846, %v902
    %v905 = vadd.f32 %v847, %v903
    %v906 = vstv %s144
    %v907 = vmul.f32 %v894, %v906
    %v908 = vmul.f32 %v895, %v906
    %v909 = vadd.f32 %v851, %v907
    %v910 = vadd.f32 %v852, %v908
    %v911 = vstv %s160
    %v912 = vmul.f32 %v894, %v911
    %v913 = vmul.f32 %v895, %v911
    %v914 = vadd.f32 %v856, %v912
    %v915 = vadd.f32 %v857, %v913
    %v916 = vstv %s176
    %v917 = vmul.f32 %v894, %v916
    %v918 = vmul.f32 %v895, %v916
    %v919 = vadd.f32 %v861, %v917
    %v920 = vadd.f32 %v862, %v918
    %v921 = vstv %s192
    %v922 = vmul.f32 %v894, %v921
    %v923 = vmul.f32 %v895, %v921
    %v924 = vadd.f32 %v866, %v922
    %v925 = vadd.f32 %v867, %v923
    %v926 = vstv %s208
    %v927 = vmul.f32 %v894, %v926
    %v928 = vmul.f32 %v895, %v926
    %v929 = vadd.f32 %v871, %v927
    %v930 = vadd.f32 %v872, %v928
    %v931 = vstv %s224
    %v932 = vmul.f32 %v894, %v931
    %v933 = vmul.f32 %v895, %v931
    %v934 = vadd.f32 %v876, %v932
    %v935 = vadd.f32 %v877, %v933
    %v936 = vstv %s73
    %v937 = vmul.f32 %v246, %v936
    %v938 = vmul.f32 %v247, %v936
    %v939 = vstv %s74
    %v940 = vmul.f32 %v250, %v939
    %v941 = vmul.f32 %v251, %v939
    %v942 = vadd.f32 %v937, %v940
    %v943 = vadd.f32 %v938, %v941
    %v944 = vstv %s75
    %v945 = vmul.f32 %v254, %v944
    %v946 = vmul.f32 %v255, %v944
    %v947 = vadd.f32 %v942, %v945
    %v948 = vadd.f32 %v943, %v946
    %v949 = vstv %s97
    %v950 = vadd.f32 %v947, %v949
    %v951 = vadd.f32 %v948, %v949
    %v952 = vmax.f32 %v950, 0.0
    %v953 = vmax.f32 %v951, 0.0
    %v954 = vstv %s113
    %v955 = vmul.f32 %v952, %v954
    %v956 = vmul.f32 %v953, %v954
    %v957 = vadd.f32 %v899, %v955
    %v958 = vadd.f32 %v900, %v956
    %v959 = vstv %s129
    %v960 = vmul.f32 %v952, %v959
    %v961 = vmul.f32 %v953, %v959
    %v962 = vadd.f32 %v904, %v960
    %v963 = vadd.f32 %v905, %v961
    %v964 = vstv %s145
    %v965 = vmul.f32 %v952, %v964
    %v966 = vmul.f32 %v953, %v964
    %v967 = vadd.f32 %v909, %v965
    %v968 = vadd.f32 %v910, %v966
    %v969 = vstv %s161
    %v970 = vmul.f32 %v952, %v969
    %v971 = vmul.f32 %v953, %v969
    %v972 = vadd.f32 %v914, %v970
    %v973 = vadd.f32 %v915, %v971
    %v974 = vstv %s177
    %v975 = vmul.f32 %v952, %v974
    %v976 = vmul.f32 %v953, %v974
    %v977 = vadd.f32 %v919, %v975
    %v978 = vadd.f32 %v920, %v976
    %v979 = vstv %s193
    %v980 = vmul.f32 %v952, %v979
    %v981 = vmul.f32 %v953, %v979
    %v982 = vadd.f32 %v924, %v980
    %v983 = vadd.f32 %v925, %v981
    %v984 = vstv %s209
    %v985 = vmul.f32 %v952, %v984
    %v986 = vmul.f32 %v953, %v984
    %v987 = vadd.f32 %v929, %v985
    %v988 = vadd.f32 %v930, %v986
    %v989 = vstv %s225
    %v990 = vmul.f32 %v952, %v989
    %v991 = vmul.f32 %v953, %v989
    %v992 = vadd.f32 %v934, %v990
    %v993 = vadd.f32 %v935, %v991
    %v994 = vstv %s76
    %v995 = vmul.f32 %v246, %v994
    %v996 = vmul.f32 %v247, %v994
    %v997 = vstv %s77
    %v998 = vmul.f32 %v250, %v997
    %v999 = vmul.f32 %v251, %v997
    %v1000 = vadd.f32 %v995, %v998
    %v1001 = vadd.f32 %v996, %v999
    %v1002 = vstv %s78
    %v1003 = vmul.f32 %v254, %v1002
    %v1004 = vmul.f32 %v255, %v1002
    %v1005 = vadd.f32 %v1000, %v1003
    %v1006 = vadd.f32 %v1001, %v1004
    %v1007 = vstv %s98
    %v1008 = vadd.f32 %v1005, %v1007
    %v1009 = vadd.f32 %v1006, %v1007
    %v1010 = vmax.f32 %v1008, 0.0
    %v1011 = vmax.f32 %v1009, 0.0
    %v1012 = vstv %s114
    %v1013 = vmul.f32 %v1010, %v1012
    %v1014 = vmul.f32 %v1011, %v1012
    %v1015 = vadd.f32 %v957, %v1013
    %v1016 = vadd.f32 %v958, %v1014
    %v1017 = vstv %s130
    %v1018 = vmul.f32 %v1010, %v1017
    %v1019 = vmul.f32 %v1011, %v1017
    %v1020 = vadd.f32 %v962, %v1018
    %v1021 = vadd.f32 %v963, %v1019
    %v1022 = vstv %s146
    %v1023 = vmul.f32 %v1010, %v1022
    %v1024 = vmul.f32 %v1011, %v1022
    %v1025 = vadd.f32 %v967, %v1023
    %v1026 = vadd.f32 %v968, %v1024
    %v1027 = vstv %s162
    %v1028 = vmul.f32 %v1010, %v1027
    %v1029 = vmul.f32 %v1011, %v1027
    %v1030 = vadd.f32 %v972, %v1028
    %v1031 = vadd.f32 %v973, %v1029
    %v1032 = vstv %s178
    %v1033 = vmul.f32 %v1010, %v1032
    %v1034 = vmul.f32 %v1011, %v1032
    %v1035 = vadd.f32 %v977, %v1033
    %v1036 = vadd.f32 %v978, %v1034
    %v1037 = vstv %s194
    %v1038 = vmul.f32 %v1010, %v1037
    %v1039 = vmul.f32 %v1011, %v1037
    %v1040 = vadd.f32 %v982, %v1038
    %v1041 = vadd.f32 %v983, %v1039
    %v1042 = vstv %s210
    %v1043 = vmul.f32 %v1010, %v1042
    %v1044 = vmul.f32 %v1011, %v1042
    %v1045 = vadd.f32 %v987, %v1043
    %v1046 = vadd.f32 %v988, %v1044
    %v1047 = vstv %s226
    %v1048 = vmul.f32 %v1010, %v1047
    %v1049 = vmul.f32 %v1011, %v1047
    %v1050 = vadd.f32 %v992, %v1048
    %v1051 = vadd.f32 %v993, %v1049
    %v1052 = vstv %s79
    %v1053 = vmul.f32 %v246, %v1052
    %v1054 = vmul.f32 %v247, %v1052
    %v1055 = vstv %s80
    %v1056 = vmul.f32 %v250, %v1055
    %v1057 = vmul.f32 %v251, %v1055
    %v1058 = vadd.f32 %v1053, %v1056
    %v1059 = vadd.f32 %v1054, %v1057
    %v1060 = vstv %s81
    %v1061 = vmul.f32 %v254, %v1060
    %v1062 = vmul.f32 %v255, %v1060
    %v1063 = vadd.f32 %v1058, %v1061
    %v1064 = vadd.f32 %v1059, %v1062
    %v1065 = vstv %s99
    %v1066 = vadd.f32 %v1063, %v1065
    %v1067 = vadd.f32 %v1064, %v1065
    %v1068 = vmax.f32 %v1066, 0.0
    %v1069 = vmax.f32 %v1067, 0.0
    %v1070 = vstv %s115
    %v1071 = vmul.f32 %v1068, %v1070
    %v1072 = vmul.f32 %v1069, %v1070
    %v1073 = vadd.f32 %v1015, %v1071
    %v1074 = vadd.f32 %v1016, %v1072
    %v1075 = vstv %s131
    %v1076 = vmul.f32 %v1068, %v1075
    %v1077 = vmul.f32 %v1069, %v1075
    %v1078 = vadd.f32 %v1020, %v1076
    %v1079 = vadd.f32 %v1021, %v1077
    %v1080 = vstv %s147
    %v1081 = vmul.f32 %v1068, %v1080
    %v1082 = vmul.f32 %v1069, %v1080
    %v1083 = vadd.f32 %v1025, %v1081
    %v1084 = vadd.f32 %v1026, %v1082
    %v1085 = vstv %s163
    %v1086 = vmul.f32 %v1068, %v1085
    %v1087 = vmul.f32 %v1069, %v1085
    %v1088 = vadd.f32 %v1030, %v1086
    %v1089 = vadd.f32 %v1031, %v1087
    %v1090 = vstv %s179
    %v1091 = vmul.f32 %v1068, %v1090
    %v1092 = vmul.f32 %v1069, %v1090
    %v1093 = vadd.f32 %v1035, %v1091
    %v1094 = vadd.f32 %v1036, %v1092
    %v1095 = vstv %s195
    %v1096 = vmul.f32 %v1068, %v1095
    %v1097 = vmul.f32 %v1069, %v1095
    %v1098 = vadd.f32 %v1040, %v1096
    %v1099 = vadd.f32 %v1041, %v1097
    %v1100 = vstv %s211
    %v1101 = vmul.f32 %v1068, %v1100
    %v1102 = vmul.f32 %v1069, %v1100
    %v1103 = vadd.f32 %v1045, %v1101
    %v1104 = vadd.f32 %v1046, %v1102
    %v1105 = vstv %s227
    %v1106 = vmul.f32 %v1068, %v1105
    %v1107 = vmul.f32 %v1069, %v1105
    %v1108 = vadd.f32 %v1050, %v1106
    %v1109 = vadd.f32 %v1051, %v1107
    %v1110 = vstv %s82
    %v1111 = vmul.f32 %v246, %v1110
    %v1112 = vmul.f32 %v247, %v1110
    %v1113 = vstv %s83
    %v1114 = vmul.f32 %v250, %v1113
    %v1115 = vmul.f32 %v251, %v1113
    %v1116 = vadd.f32 %v1111, %v1114
    %v1117 = vadd.f32 %v1112, %v1115
    %v1118 = vstv %s84
    %v1119 = vmul.f32 %v254, %v1118
    %v1120 = vmul.f32 %v255, %v1118
    %v1121 = vadd.f32 %v1116, %v1119
    %v1122 = vadd.f32 %v1117, %v1120
    %v1123 = vstv %s100
    %v1124 = vadd.f32 %v1121, %v1123
    %v1125 = vadd.f32 %v1122, %v1123
    %v1126 = vmax.f32 %v1124, 0.0
    %v1127 = vmax.f32 %v1125, 0.0
    %v1128 = vstv %s116
    %v1129 = vmul.f32 %v1126, %v1128
    %v1130 = vmul.f32 %v1127, %v1128
    %v1131 = vadd.f32 %v1073, %v1129
    %v1132 = vadd.f32 %v1074, %v1130
    %v1133 = vstv %s132
    %v1134 = vmul.f32 %v1126, %v1133
    %v1135 = vmul.f32 %v1127, %v1133
    %v1136 = vadd.f32 %v1078, %v1134
    %v1137 = vadd.f32 %v1079, %v1135
    %v1138 = vstv %s148
    %v1139 = vmul.f32 %v1126, %v1138
    %v1140 = vmul.f32 %v1127, %v1138
    %v1141 = vadd.f32 %v1083, %v1139
    %v1142 = vadd.f32 %v1084, %v1140
    %v1143 = vstv %s164
    %v1144 = vmul.f32 %v1126, %v1143
    %v1145 = vmul.f32 %v1127, %v1143
    %v1146 = vadd.f32 %v1088, %v1144
    %v1147 = vadd.f32 %v1089, %v1145
    %v1148 = vstv %s180
    %v1149 = vmul.f32 %v1126, %v1148
    %v1150 = vmul.f32 %v1127, %v1148
    %v1151 = vadd.f32 %v1093, %v1149
    %v1152 = vadd.f32 %v1094, %v1150
    %v1153 = vstv %s196
    %v1154 = vmul.f32 %v1126, %v1153
    %v1155 = vmul.f32 %v1127, %v1153
    %v1156 = vadd.f32 %v1098, %v1154
    %v1157 = vadd.f32 %v1099, %v1155
    %v1158 = vstv %s212
    %v1159 = vmul.f32 %v1126, %v1158
    %v1160 = vmul.f32 %v1127, %v1158
    %v1161 = vadd.f32 %v1103, %v1159
    %v1162 = vadd.f32 %v1104, %v1160
    %v1163 = vstv %s228
    %v1164 = vmul.f32 %v1126, %v1163
    %v1165 = vmul.f32 %v1127, %v1163
    %v1166 = vadd.f32 %v1108, %v1164
    %v1167 = vadd.f32 %v1109, %v1165
    %v1168 = vstv %s229
    %v1169 = vadd.f32 %v1131, %v1168
    %v1170 = vadd.f32 %v1132, %v1168
    %v1171 = vmax.f32 %v1169, 0.0
    %v1172 = vmax.f32 %v1170, 0.0
    %v1173 = vstv %s237
    %v1174 = vmul.f32 %v1171, %v1173
    %v1175 = vmul.f32 %v1172, %v1173
    %v1176 = vstv %s230
    %v1177 = vadd.f32 %v1136, %v1176
    %v1178 = vadd.f32 %v1137, %v1176
    %v1179 = vmax.f32 %v1177, 0.0
    %v1180 = vmax.f32 %v1178, 0.0
    %v1181 = vstv %s238
    %v1182 = vmul.f32 %v1179, %v1181
    %v1183 = vmul.f32 %v1180, %v1181
    %v1184 = vadd.f32 %v1174, %v1182
    %v1185 = vadd.f32 %v1175, %v1183
    %v1186 = vstv %s231
    %v1187 = vadd.f32 %v1141, %v1186
    %v1188 = vadd.f32 %v1142, %v1186
    %v1189 = vmax.f32 %v1187, 0.0
    %v1190 = vmax.f32 %v1188, 0.0
    %v1191 = vstv %s239
    %v1192 = vmul.f32 %v1189, %v1191
    %v1193 = vmul.f32 %v1190, %v1191
    %v1194 = vadd.f32 %v1184, %v1192
    %v1195 = vadd.f32 %v1185, %v1193
    %v1196 = vstv %s232
    %v1197 = vadd.f32 %v1146, %v1196
    %v1198 = vadd.f32 %v1147, %v1196
    %v1199 = vmax.f32 %v1197, 0.0
    %v1200 = vmax.f32 %v1198, 0.0
    %v1201 = vstv %s240
    %v1202 = vmul.f32 %v1199, %v1201
    %v1203 = vmul.f32 %v1200, %v1201
    %v1204 = vadd.f32 %v1194, %v1202
    %v1205 = vadd.f32 %v1195, %v1203
    %v1206 = vstv %s233
    %v1207 = vadd.f32 %v1151, %v1206
    %v1208 = vadd.f32 %v1152, %v1206
    %v1209 = vmax.f32 %v1207, 0.0
    %v1210 = vmax.f32 %v1208, 0.0
    %v1211 = vstv %s241
    %v1212 = vmul.f32 %v1209, %v1211
    %v1213 = vmul.f32 %v1210, %v1211
    %v1214 = vadd.f32 %v1204, %v1212
    %v1215 = vadd.f32 %v1205, %v1213
    %v1216 = vstv %s234
    %v1217 = vadd.f32 %v1156, %v1216
    %v1218 = vadd.f32 %v1157, %v1216
    %v1219 = vmax.f32 %v1217, 0.0
    %v1220 = vmax.f32 %v1218, 0.0
    %v1221 = vstv %s242
    %v1222 = vmul.f32 %v1219, %v1221
    %v1223 = vmul.f32 %v1220, %v1221
    %v1224 = vadd.f32 %v1214, %v1222
    %v1225 = vadd.f32 %v1215, %v1223
    %v1226 = vstv %s235
    %v1227 = vadd.f32 %v1161, %v1226
    %v1228 = vadd.f32 %v1162, %v1226
    %v1229 = vmax.f32 %v1227, 0.0
    %v1230 = vmax.f32 %v1228, 0.0
    %v1231 = vstv %s243
    %v1232 = vmul.f32 %v1229, %v1231
    %v1233 = vmul.f32 %v1230, %v1231
    %v1234 = vadd.f32 %v1224, %v1232
    %v1235 = vadd.f32 %v1225, %v1233
    %v1236 = vstv %s236
    %v1237 = vadd.f32 %v1166, %v1236
    %v1238 = vadd.f32 %v1167, %v1236
    %v1239 = vmax.f32 %v1237, 0.0
    %v1240 = vmax.f32 %v1238, 0.0
    %v1241 = vstv %s244
    %v1242 = vmul.f32 %v1239, %v1241
    %v1243 = vmul.f32 %v1240, %v1241
    %v1244 = vadd.f32 %v1234, %v1242
    %v1245 = vadd.f32 %v1235, %v1243
    %v1246 = vstv %s245
    %v1247 = vadd.f32 %v1244, %v1246
    %v1248 = vadd.f32 %v1245, %v1246
    %1249 = vst [vmem:[#allocation7] sm:$0xff] %v1247
    %1250 = vst [vmem:[#allocation7 + $0x8] sm:$0xff] %v1248
    // Predicated region
    $region18: #{tpu_custom_call.1} parent=1 // pred_check
      _
    $region19: #{tpu_custom_call.1} parent=1 // pred_check_branch
      %1252 = sbr.rel (0) target = $region21
    $region20: #{tpu_custom_call.1} parent=1 // pred_region
      %s1254 = ssub.s32 256, 256
      %1255 = vsyncadd [#allocation4], %s1254
      %s1256 = sshll.u32 [#allocation7], 4
      %s1257 = int_to_ptr.vmem [resolvable:$true] %s1256
      %1262 = dma.vmem_to_hbm [thread:$0]  %s1257, 256, %s2, [#allocation4], 128, 128, 8
    $region21: #{tpu_custom_call.1} parent=1 // pred_fallthru
      _
    // Predicated region
    $region22: #{tpu_custom_call.1} parent=1 // pred_check
      _
    $region23: #{tpu_custom_call.1} parent=1 // pred_check_branch
      %1264 = sbr.rel (0) target = $region25
    $region24: #{tpu_custom_call.1} parent=1 // pred_region
      %1265 = dma.done [#allocation4], 256
    $region25: #{tpu_custom_call.1} parent=1 // pred_fallthru
      _
    %1266 = vsyncpa [#allocation3], 1
    %1267 = vsyncpa [#allocation4], 1
    %1268 = vsyncpa [#allocation5], 1

</llo_original>
